<compile_context>
chip_gen: v6e
topology: v6e:2x2x1
jax: 0.10.0
libtpu: 0.0.40
codegen_flags: <defaults>
</compile_context>

<pallas_src>
import math
import functools

import jax
import jax.numpy as jnp
from jax.experimental import pallas as pl
from jax.experimental.pallas import tpu as pltpu


# ----------------------------------------------------------------------------
# Fused Pallas kernel.
#   grid = (batch_blocks ["parallel"], num_layers ["arbitrary"])
#   The bf16 output block (constant index over the layer axis) is the
#   layer-to-layer activation carry; per-layer bf16 weights stream through
#   double-buffered VMEM blocks; attention weights stream out per layer.
# ----------------------------------------------------------------------------
def _encoder_stack_kernel(
    x0_ref, mbias_ref,
    wqkv_ref, bqkv_ref, wo_ref, bo_ref,
    w1_ref, b1_ref, w2_ref, b2_ref,
    out_ref, attn_ref,
    *, seq: int, num_heads: int,
):
    layer = pl.program_id(1)

    Nb, D = out_ref.shape                  # Nb = batch_block * seq
    S, H = seq, num_heads
    Bb = Nb // S
    dk = D // H
    inv_sqrt_dk = 1.0 / math.sqrt(dk)
    f32 = jnp.float32
    bf16 = jnp.bfloat16

    # Layer 0: load this batch block's embeddings into the resident carry.
    # TODO(synk): on v7x, stream x0 via memory_space=pl.ANY + make_async_copy
    # straight into the carry to drop its resident VMEM block entirely.
    @pl.when(layer == 0)
    def _():
        out_ref[...] = x0_ref[...]

    x = out_ref[...]                                            # (Nb, D) bf16

    # --- fused QKV projection: one (Nb,D) x (D,3D) bf16 MXU matmul ----------
    qkv = (jnp.dot(x, wqkv_ref[0], preferred_element_type=f32)
           + bqkv_ref[0]).astype(bf16)                          # (Nb, 3D)
    q = qkv[:, 0 * D:1 * D].reshape(Bb, S, D)
    k = qkv[:, 1 * D:2 * D].reshape(Bb, S, D)
    v = qkv[:, 2 * D:3 * D].reshape(Bb, S, D)

    # Additive key-padding bias (0 = keep, -1e9 = pad); implicit broadcast.
    bias = mbias_ref[...]                                       # (Bb, 1, S)

    # --- multi-head scaled dot-product attention -----------------------------
    # Short static head loop; each head's probabilities go straight into their
    # lane slot of attn_ref, each head's context is folded into Wo on the fly.
    # TODO(synk): for real model sizes, pad D/F/H*S to multiples of 128 and
    # permute the QKV columns so per-head slices are 128-lane aligned.
    acc = jnp.zeros((Nb, D), f32)
    for h in range(H):
        qh = q[:, :, h * dk:(h + 1) * dk]                       # (Bb, S, dk)
        kh = k[:, :, h * dk:(h + 1) * dk]
        vh = v[:, :, h * dk:(h + 1) * dk]

        s = jnp.einsum('bqd,bkd->bqk', qh, kh,
                       preferred_element_type=f32) * inv_sqrt_dk
        s = s + bias
        s = s - jnp.max(s, axis=-1, keepdims=True)
        e = jnp.exp(s)
        p = e * pl.reciprocal(jnp.sum(e, axis=-1, keepdims=True), approx=True)
        p16 = p.astype(bf16)

        # Direct slotted store of this head's attention weights.
        attn_ref[0, :, :, h * S:(h + 1) * S] = p16

        ctx = jnp.einsum('bqk,bkd->bqd', p16, vh,
                         preferred_element_type=f32)            # (Bb, S, dk)
        acc = acc + jnp.dot(ctx.reshape(Nb, dk).astype(bf16),
                            wo_ref[0, h * dk:(h + 1) * dk, :],
                            preferred_element_type=f32)

    attn_out = (acc + bo_ref[0]).astype(bf16)                   # (Nb, D)

    # --- position-wise feed-forward ------------------------------------------
    hid = jnp.dot(attn_out, w1_ref[0], preferred_element_type=f32) + b1_ref[0]
    hid = jnp.maximum(hid, 0.0).astype(bf16)
    y = jnp.dot(hid, w2_ref[0], preferred_element_type=f32) + b2_ref[0]

    # Carry to the next layer; written back to HBM once per batch block.
    out_ref[...] = y.astype(out_ref.dtype)


def encoder_stack(x_flat, mask_bias, p, *, batch, seq, num_heads,
                  batch_block=None):
    """x_flat: (B*S, D) bf16 embeddings; mask_bias: (B, 1, S) f32 additive bias.

    Returns (out_flat (B*S, D) bf16, attn_packed (L, B, S, H*S) bf16)."""
    N, D = x_flat.shape
    L = p["wqkv"].shape[0]
    F = p["w1"].shape[2]
    B, S, H = batch, seq, num_heads
    if batch_block is None:
        batch_block = B
    assert B % batch_block == 0
    n_bblk = B // batch_block
    Nb = batch_block * S

    def wspec(a, b):   # per-layer weight slice, streamed over the layer axis
        return pl.BlockSpec((1, a, b), lambda bb, l: (l, 0, 0))

    kernel = functools.partial(_encoder_stack_kernel, seq=S, num_heads=H)

    # VMEM budget: x0 block + carry + per-layer weight slices + streamed
    # attention block, all double-buffered, with compute headroom.
    def nbytes(shape, dt):
        n = 1
        for d in shape:
            n *= d
        return n * jnp.dtype(dt).itemsize

    wbytes = (nbytes((D, 3 * D), jnp.bfloat16) + nbytes((1, 3 * D), jnp.float32)
              + nbytes((D, D), jnp.bfloat16) + nbytes((1, D), jnp.float32)
              + nbytes((D, F), jnp.bfloat16) + nbytes((1, F), jnp.float32)
              + nbytes((F, D), jnp.bfloat16) + nbytes((1, D), jnp.float32))
    resident = 2 * (2 * nbytes((Nb, D), jnp.bfloat16)
                    + nbytes((batch_block, S, H * S), jnp.bfloat16)
                    + nbytes((batch_block, 1, S), jnp.float32)
                    + wbytes)
    vmem_limit = int(min(56 * 2 ** 20, max(32 * 2 ** 20, 3 * resident)))

    out, attn = pl.pallas_call(
        kernel,
        out_shape=(
            jax.ShapeDtypeStruct((N, D), jnp.bfloat16),
            jax.ShapeDtypeStruct((L, B, S, H * S), jnp.bfloat16),
        ),
        grid=(n_bblk, L),
        in_specs=[
            # Embeddings for this batch block (read once, at layer 0).
            pl.BlockSpec((Nb, D), lambda bb, l: (bb, 0)),
            # Mask bias for this batch block (resident).
            pl.BlockSpec((batch_block, 1, S), lambda bb, l: (bb, 0, 0)),
            wspec(D, 3 * D), wspec(1, 3 * D),              # Wqkv, bqkv
            wspec(D, D), wspec(1, D),                      # Wo, bo
            wspec(D, F), wspec(1, F),                      # W1, b1
            wspec(F, D), wspec(1, D),                      # W2, b2
        ],
        out_specs=(
            # Constant block index over the layer axis -> VMEM-resident carry.
            pl.BlockSpec((Nb, D), lambda bb, l: (bb, 0)),
            # Attention weights streamed back to HBM every (batch block, layer).
            pl.BlockSpec((1, batch_block, S, H * S), lambda bb, l: (l, bb, 0, 0)),
        ),
        compiler_params=pltpu.CompilerParams(
            # Batch blocks are independent -> parallel (v7x megacore).
            # The layer axis carries the activations -> arbitrary, innermost.
            dimension_semantics=("parallel", "arbitrary"),
            vmem_limit_bytes=vmem_limit,
        ),
    )(
        x_flat, mask_bias,
        p["wqkv"], p["bqkv"], p["wo"], p["bo"],
        p["w1"], p["b1"], p["w2"], p["b2"],
    )
    return out, attn


# ----------------------------------------------------------------------------
# Embeddings (gather + sinusoidal PE) -- glue, done in plain JAX.
# ----------------------------------------------------------------------------
def sinusoidal_pe(max_len, d_model):
    pos = jnp.arange(max_len, dtype=jnp.float32)[:, None]
    i = jnp.arange(0, d_model, 2, dtype=jnp.float32)[None, :]
    angle = pos / jnp.power(10000.0, i / d_model)
    pe = jnp.zeros((max_len, d_model), dtype=jnp.float32)
    pe = pe.at[:, 0::2].set(jnp.sin(angle))
    pe = pe.at[:, 1::2].set(jnp.cos(angle))
    return pe


def embed(tokens, emb_table, d_model):
    S = tokens.shape[1]
    pe = sinusoidal_pe(S, d_model)
    return emb_table[tokens] * math.sqrt(d_model) + pe[None, :S, :]


# ----------------------------------------------------------------------------
# Parameter init (deterministic) and full forward.
# ----------------------------------------------------------------------------
def init_params(key, vocab_size, d_model, d_ff, num_layers):
    keys = jax.random.split(key, 1 + num_layers)
    emb = jax.random.normal(keys[0], (vocab_size, d_model), jnp.float32) * 0.02
    s = 1.0 / math.sqrt(d_model)
    bf16 = jnp.bfloat16

    def layer_params(k):
        ks = jax.random.split(k, 10)
        wq = jax.random.normal(ks[0], (d_model, d_model), jnp.float32) * s
        wk = jax.random.normal(ks[1], (d_model, d_model), jnp.float32) * s
        wv = jax.random.normal(ks[2], (d_model, d_model), jnp.float32) * s
        return {
            # bf16 weights (MXU-native); f32 biases (added post f32-accumulate).
            "wqkv": jnp.concatenate([wq, wk, wv], axis=1).astype(bf16),  # (D,3D)
            "bqkv": jax.random.normal(ks[3], (1, 3 * d_model), jnp.float32) * 0.01,
            "wo": (jax.random.normal(ks[4], (d_model, d_model), jnp.float32) * s
                   ).astype(bf16),
            "bo": jax.random.normal(ks[5], (1, d_model), jnp.float32) * 0.01,
            "w1": (jax.random.normal(ks[6], (d_model, d_ff), jnp.float32) * s
                   ).astype(bf16),
            "b1": jax.random.normal(ks[7], (1, d_ff), jnp.float32) * 0.01,
            "w2": (jax.random.normal(ks[8], (d_ff, d_model), jnp.float32)
                   * (1.0 / math.sqrt(d_ff))).astype(bf16),
            "b2": jax.random.normal(ks[9], (1, d_model), jnp.float32) * 0.01,
        }

    layers = [layer_params(keys[i + 1]) for i in range(num_layers)]
    stack = jax.tree_util.tree_map(lambda *xs: jnp.stack(xs, axis=0), *layers)
    return {"emb": emb, "stack": stack}


def encoder_forward(tokens, mask, params, *, d_model, num_heads,
                    batch_block=None):
    """tokens: (B,S) int32; mask: (B,1,1,S) float or None.

    Returns (out (B,S,D) f32, {'encoder_layer{i}': (B,H,S,S) f32})."""
    B, S = tokens.shape
    x = embed(tokens, params["emb"], d_model)                   # (B, S, D) f32

    if mask is None:
        mbias = jnp.zeros((B, 1, S), jnp.float32)
    else:
        mbias = (mask.reshape(B, 1, S).astype(jnp.float32) - 1.0) * 1e9

    out_flat, attn_packed = encoder_stack(
        x.reshape(B * S, d_model).astype(jnp.bfloat16), mbias, params["stack"],
        batch=B, seq=S, num_heads=num_heads, batch_block=batch_block)

    out = out_flat.astype(jnp.float32).reshape(B, S, d_model)
    L = attn_packed.shape[0]
    # (L, B, S, H*S) -> (L, B, H, S, S)
    attn = attn_packed.astype(jnp.float32).reshape(L, B, S, num_heads, S)
    attn = attn.transpose(0, 1, 3, 2, 4)
    attention_weights = {f"encoder_layer{i + 1}": attn[i] for i in range(L)}
    return out, attention_weights


# ----------------------------------------------------------------------------
# Pure-JAX reference (f32, same bf16-quantized weights) for correctness check.
# ----------------------------------------------------------------------------
def reference_forward(tokens, mask, params, *, d_model, num_heads):
    B, S = tokens.shape
    H = num_heads
    dk = d_model // H
    x = embed(tokens, params["emb"], d_model)
    if mask is None:
        mb = jnp.zeros((B, 1, 1, S), jnp.float32)
    else:
        mb = (mask.reshape(B, 1, 1, S).astype(jnp.float32) - 1.0) * 1e9
    st = params["stack"]
    L = st["wqkv"].shape[0]
    attns = {}
    for i in range(L):
        wqkv = st["wqkv"][i].astype(jnp.float32)
        wo = st["wo"][i].astype(jnp.float32)
        w1 = st["w1"][i].astype(jnp.float32)
        w2 = st["w2"][i].astype(jnp.float32)
        qkv = x @ wqkv + st["bqkv"][i]
        q, k, v = jnp.split(qkv, 3, axis=-1)
        q = q.reshape(B, S, H, dk).transpose(0, 2, 1, 3)
        k = k.reshape(B, S, H, dk).transpose(0, 2, 1, 3)
        v = v.reshape(B, S, H, dk).transpose(0, 2, 1, 3)
        scores = (q @ k.transpose(0, 1, 3, 2)) / math.sqrt(dk) + mb
        p = jax.nn.softmax(scores, axis=-1)
        ctx = (p @ v).transpose(0, 2, 1, 3).reshape(B, S, d_model)
        a = ctx @ wo + st["bo"][i]
        h1 = jnp.maximum(a @ w1 + st["b1"][i], 0.0)
        x = h1 @ w2 + st["b2"][i]
        attns[f"encoder_layer{i + 1}"] = p
    return x, attns


# ----------------------------------------------------------------------------
if __name__ == "__main__":
    vocab_size = 50
    d_model = 32
    num_heads = 4
    d_ff = 64
    num_layers = 2
    B, S = 2, 8

    key = jax.random.PRNGKey(0)
    k_tok, k_param = jax.random.split(key)

    tokens = jax.random.randint(k_tok, (B, S), 0, vocab_size, dtype=jnp.int32)
    mask = jnp.ones((B, 1, 1, S), jnp.float32)   # padding mask, all valid

    params = init_params(k_param, vocab_size, d_model, d_ff, num_layers)

    # batch_block=1 exercises the parallel batch-block grid axis (2 blocks).
    out, attn_weights = encoder_forward(
        tokens, mask, params, d_model=d_model, num_heads=num_heads,
        batch_block=1)

    out = jax.block_until_ready(out)
    for v in attn_weights.values():
        jax.block_until_ready(v)

    assert out.shape == (B, S, d_model)
    for i in range(num_layers):
        a = attn_weights[f"encoder_layer{i + 1}"]
        assert a.shape == (B, num_heads, S, S)
        # bf16 storage + approx reciprocal => loose row-sum tolerance
        assert jnp.allclose(jnp.sum(a, axis=-1), 1.0, atol=3e-2)

    # compare against a pure-JAX f32 reference (bf16 kernel -> loose tolerances)
    ref_out, ref_attn = reference_forward(
        tokens, mask, params, d_model=d_model, num_heads=num_heads)
    assert float(jnp.max(jnp.abs(out - ref_out))) < 2e-1
    for i in range(num_layers):
        d = jnp.max(jnp.abs(attn_weights[f"encoder_layer{i + 1}"]
                            - ref_attn[f"encoder_layer{i + 1}"]))
        assert float(d) < 1e-1

    print("KERNEL_OK")
</pallas_src>

<mosaic_0001>
module attributes {stable_mosaic.version = 11 : i64} {
  func.func @_encoder_stack_kernel(%arg0: i32, %arg1: i32, %arg2: memref<8x32xbf16, #tpu.memory_space<vmem>>, %arg3: memref<1x1x8xf32, #tpu.memory_space<vmem>>, %arg4: memref<1x32x96xbf16, #tpu.memory_space<vmem>>, %arg5: memref<1x1x96xf32, #tpu.memory_space<vmem>>, %arg6: memref<1x32x32xbf16, #tpu.memory_space<vmem>>, %arg7: memref<1x1x32xf32, #tpu.memory_space<vmem>>, %arg8: memref<1x32x64xbf16, #tpu.memory_space<vmem>>, %arg9: memref<1x1x64xf32, #tpu.memory_space<vmem>>, %arg10: memref<1x64x32xbf16, #tpu.memory_space<vmem>>, %arg11: memref<1x1x32xf32, #tpu.memory_space<vmem>>, %arg12: memref<8x32xbf16, #tpu.memory_space<vmem>>, %arg13: memref<1x1x8x32xbf16, #tpu.memory_space<vmem>>) attributes {dimension_semantics = [#tpu.dimension_semantics<parallel>, #tpu.dimension_semantics<arbitrary>], iteration_bounds = array<i64: 2, 2>, scalar_prefetch = 0 : i64, scratch_operands = 0 : i64, tpu.core_type = #tpu.core_type<tc>, window_params = [{transform_indices = @transform_0, window_bounds = array<i64: 8, 32>}, {transform_indices = @transform_1, window_bounds = array<i64: 1, 1, 8>}, {transform_indices = @transform_2, window_bounds = array<i64: 1, 32, 96>}, {transform_indices = @transform_3, window_bounds = array<i64: 1, 1, 96>}, {transform_indices = @transform_4, window_bounds = array<i64: 1, 32, 32>}, {transform_indices = @transform_5, window_bounds = array<i64: 1, 1, 32>}, {transform_indices = @transform_6, window_bounds = array<i64: 1, 32, 64>}, {transform_indices = @transform_7, window_bounds = array<i64: 1, 1, 64>}, {transform_indices = @transform_8, window_bounds = array<i64: 1, 64, 32>}, {transform_indices = @transform_9, window_bounds = array<i64: 1, 1, 32>}, {transform_indices = @transform_10, window_bounds = array<i64: 8, 32>}, {transform_indices = @transform_11, window_bounds = array<i64: 1, 1, 8, 32>}]} {
    %c0_i32 = arith.constant 0 : i32
    %0 = arith.cmpi eq, %arg1, %c0_i32 : i32
    %1 = arith.extui %0 : i1 to i32
    %c0_i32_0 = arith.constant 0 : i32
    %2 = arith.cmpi ne, %1, %c0_i32_0 : i32
    scf.if %2 {
      %c0_81 = arith.constant 0 : index
      %c0_82 = arith.constant 0 : index
      %160 = vector.load %arg2[%c0_81, %c0_82] : memref<8x32xbf16, #tpu.memory_space<vmem>>, vector<8x32xbf16>
      %c0_83 = arith.constant 0 : index
      %c0_84 = arith.constant 0 : index
      %161 = vector.load %arg12[%c0_83, %c0_84] : memref<8x32xbf16, #tpu.memory_space<vmem>>, vector<8x32xbf16>
      tpu.vector_store %arg12[%c0_83, %c0_84], %160 {strides = array<i32>} : memref<8x32xbf16, #tpu.memory_space<vmem>>, vector<8x32xbf16>,
    } else {
    }
    %c0 = arith.constant 0 : index
    %c0_1 = arith.constant 0 : index
    %3 = vector.load %arg12[%c0, %c0_1] : memref<8x32xbf16, #tpu.memory_space<vmem>>, vector<8x32xbf16>
    %c0_2 = arith.constant 0 : index
    %c0_3 = arith.constant 0 : index
    %c0_4 = arith.constant 0 : index
    %4 = vector.load %arg4[%c0_2, %c0_3, %c0_4] : memref<1x32x96xbf16, #tpu.memory_space<vmem>>, vector<1x32x96xbf16>
    %5 = vector.shape_cast %4 : vector<1x32x96xbf16> to vector<32x96xbf16>
    %cst = arith.constant dense<0.000000e+00> : vector<8x96xf32>
    %6 = tpu.matmul %3, %5, %cst {dimension_numbers = #tpu.dot_dimension_numbers<[1], [0], [0], [1], [0, 0, 1, 1], [], []>} : vector<8x32xbf16>, vector<32x96xbf16>, vector<8x96xf32> -> vector<8x96xf32>
    %c0_5 = arith.constant 0 : index
    %c0_6 = arith.constant 0 : index
    %c0_7 = arith.constant 0 : index
    %7 = vector.load %arg5[%c0_5, %c0_6, %c0_7] : memref<1x1x96xf32, #tpu.memory_space<vmem>>, vector<1x1x96xf32>
    %8 = vector.shape_cast %7 : vector<1x1x96xf32> to vector<1x96xf32>
    %9 = vector.broadcast %8 : vector<1x96xf32> to vector<8x96xf32>
    %10 = arith.addf %6, %9 : vector<8x96xf32>
    %11 = arith.truncf %10 : vector<8x96xf32> to vector<8x96xbf16>
    %12 = vector.extract_strided_slice %11 {offsets = [0, 0], sizes = [8, 32], strides = [1, 1]} : vector<8x96xbf16> to vector<8x32xbf16>
    %13 = vector.shape_cast %12 : vector<8x32xbf16> to vector<1x8x32xbf16>
    %14 = vector.extract_strided_slice %11 {offsets = [0, 32], sizes = [8, 32], strides = [1, 1]} : vector<8x96xbf16> to vector<8x32xbf16>
    %15 = vector.shape_cast %14 : vector<8x32xbf16> to vector<1x8x32xbf16>
    %16 = vector.extract_strided_slice %11 {offsets = [0, 64], sizes = [8, 32], strides = [1, 1]} : vector<8x96xbf16> to vector<8x32xbf16>
    %17 = vector.shape_cast %16 : vector<8x32xbf16> to vector<1x8x32xbf16>
    %c0_8 = arith.constant 0 : index
    %c0_9 = arith.constant 0 : index
    %c0_10 = arith.constant 0 : index
    %18 = vector.load %arg3[%c0_8, %c0_9, %c0_10] : memref<1x1x8xf32, #tpu.memory_space<vmem>>, vector<1x1x8xf32>
    %cst_11 = arith.constant 0.000000e+00 : f32
    %19 = vector.broadcast %cst_11 : f32 to vector<8x32xf32>
    %20 = vector.extract_strided_slice %13 {offsets = [0, 0, 0], sizes = [1, 8, 8], strides = [1, 1, 1]} : vector<1x8x32xbf16> to vector<1x8x8xbf16>
    %21 = vector.extract_strided_slice %15 {offsets = [0, 0, 0], sizes = [1, 8, 8], strides = [1, 1, 1]} : vector<1x8x32xbf16> to vector<1x8x8xbf16>
    %22 = vector.extract_strided_slice %17 {offsets = [0, 0, 0], sizes = [1, 8, 8], strides = [1, 1, 1]} : vector<1x8x32xbf16> to vector<1x8x8xbf16>
    "tpu.trace_start"() <{level = 10 : i32, message = "bqd,bkd->bqk"}> : () -> ()
    %cst_12 = arith.constant dense<0.000000e+00> : vector<1x8x8xf32>
    %23 = tpu.matmul %20, %21, %cst_12 {dimension_numbers = #tpu.dot_dimension_numbers<[2], [2], [1], [1], [0, 0, 0, 1, 1, 1], [0], [0]>} : vector<1x8x8xbf16>, vector<1x8x8xbf16>, vector<1x8x8xf32> -> vector<1x8x8xf32>
    "tpu.trace_stop"() : () -> ()
    %cst_13 = arith.constant 0.353553385 : f32
    %24 = vector.broadcast %cst_13 : f32 to vector<1x8x8xf32>
    %25 = arith.mulf %23, %24 : vector<1x8x8xf32>
    %26 = vector.broadcast %18 : vector<1x1x8xf32> to vector<1x8x8xf32>
    %27 = arith.addf %25, %26 : vector<1x8x8xf32>
    %cst_14 = arith.constant dense<0xFF800000> : vector<1x8xf32>
    %28 = vector.multi_reduction <maximumf>, %27, %cst_14 [2] : vector<1x8x8xf32> to vector<1x8xf32>
    %29 = vector.shape_cast %28 : vector<1x8xf32> to vector<1x8x1xf32>
    %30 = vector.broadcast %29 : vector<1x8x1xf32> to vector<1x8x8xf32>
    %31 = arith.subf %27, %30 : vector<1x8x8xf32>
    %32 = math.exp %31 : vector<1x8x8xf32>
    %cst_15 = arith.constant dense<0.000000e+00> : vector<1x8xf32>
    %33 = vector.multi_reduction <add>, %32, %cst_15 [2] : vector<1x8x8xf32> to vector<1x8xf32>
    %34 = vector.shape_cast %33 : vector<1x8xf32> to vector<1x8x1xf32>
    %35 = tpu.reciprocal %34 {approx = true} : vector<1x8x1xf32> -> vector<1x8x1xf32>
    %36 = vector.broadcast %35 : vector<1x8x1xf32> to vector<1x8x8xf32>
    %37 = arith.mulf %32, %36 : vector<1x8x8xf32>
    %38 = arith.truncf %37 : vector<1x8x8xf32> to vector<1x8x8xbf16>
    %c0_16 = arith.constant 0 : index
    %c0_17 = arith.constant 0 : index
    %c0_18 = arith.constant 0 : index
    %c0_19 = arith.constant 0 : index
    %39 = vector.load %arg13[%c0_16, %c0_17, %c0_18, %c0_19] : memref<1x1x8x32xbf16, #tpu.memory_space<vmem>>, vector<1x1x8x8xbf16>
    %40 = vector.shape_cast %39 : vector<1x1x8x8xbf16> to vector<1x8x8xbf16>
    %41 = vector.shape_cast %38 : vector<1x8x8xbf16> to vector<1x1x8x8xbf16>
    tpu.vector_store %arg13[%c0_16, %c0_17, %c0_18, %c0_19], %41 {strides = array<i32>} : memref<1x1x8x32xbf16, #tpu.memory_space<vmem>>, vector<1x1x8x8xbf16>,
    "tpu.trace_start"() <{level = 10 : i32, message = "bqk,bkd->bqd"}> : () -> ()
    %cst_20 = arith.constant dense<0.000000e+00> : vector<1x8x8xf32>
    %42 = tpu.matmul %38, %22, %cst_20 {dimension_numbers = #tpu.dot_dimension_numbers<[2], [1], [1], [2], [0, 0, 0, 1, 1, 2], [0], [0]>} : vector<1x8x8xbf16>, vector<1x8x8xbf16>, vector<1x8x8xf32> -> vector<1x8x8xf32>
    "tpu.trace_stop"() : () -> ()
    %43 = vector.shape_cast %42 : vector<1x8x8xf32> to vector<8x8xf32>
    %44 = arith.truncf %43 : vector<8x8xf32> to vector<8x8xbf16>
    %c0_21 = arith.constant 0 : index
    %c0_22 = arith.constant 0 : index
    %c0_23 = arith.constant 0 : index
    %45 = vector.load %arg6[%c0_21, %c0_22, %c0_23] : memref<1x32x32xbf16, #tpu.memory_space<vmem>>, vector<1x8x32xbf16>
    %46 = vector.shape_cast %45 : vector<1x8x32xbf16> to vector<8x32xbf16>
    %cst_24 = arith.constant dense<0.000000e+00> : vector<8x32xf32>
    %47 = tpu.matmul %44, %46, %cst_24 {dimension_numbers = #tpu.dot_dimension_numbers<[1], [0], [0], [1], [0, 0, 1, 1], [], []>} : vector<8x8xbf16>, vector<8x32xbf16>, vector<8x32xf32> -> vector<8x32xf32>
    %48 = arith.addf %19, %47 : vector<8x32xf32>
    %49 = vector.extract_strided_slice %13 {offsets = [0, 0, 8], sizes = [1, 8, 8], strides = [1, 1, 1]} : vector<1x8x32xbf16> to vector<1x8x8xbf16>
    %50 = vector.extract_strided_slice %15 {offsets = [0, 0, 8], sizes = [1, 8, 8], strides = [1, 1, 1]} : vector<1x8x32xbf16> to vector<1x8x8xbf16>
    %51 = vector.extract_strided_slice %17 {offsets = [0, 0, 8], sizes = [1, 8, 8], strides = [1, 1, 1]} : vector<1x8x32xbf16> to vector<1x8x8xbf16>
    "tpu.trace_start"() <{level = 10 : i32, message = "bqd,bkd->bqk"}> : () -> ()
    %cst_25 = arith.constant dense<0.000000e+00> : vector<1x8x8xf32>
    %52 = tpu.matmul %49, %50, %cst_25 {dimension_numbers = #tpu.dot_dimension_numbers<[2], [2], [1], [1], [0, 0, 0, 1, 1, 1], [0], [0]>} : vector<1x8x8xbf16>, vector<1x8x8xbf16>, vector<1x8x8xf32> -> vector<1x8x8xf32>
    "tpu.trace_stop"() : () -> ()
    %cst_26 = arith.constant 0.353553385 : f32
    %53 = vector.broadcast %cst_26 : f32 to vector<1x8x8xf32>
    %54 = arith.mulf %52, %53 : vector<1x8x8xf32>
    %55 = vector.broadcast %18 : vector<1x1x8xf32> to vector<1x8x8xf32>
    %56 = arith.addf %54, %55 : vector<1x8x8xf32>
    %cst_27 = arith.constant dense<0xFF800000> : vector<1x8xf32>
    %57 = vector.multi_reduction <maximumf>, %56, %cst_27 [2] : vector<1x8x8xf32> to vector<1x8xf32>
    %58 = vector.shape_cast %57 : vector<1x8xf32> to vector<1x8x1xf32>
    %59 = vector.broadcast %58 : vector<1x8x1xf32> to vector<1x8x8xf32>
    %60 = arith.subf %56, %59 : vector<1x8x8xf32>
    %61 = math.exp %60 : vector<1x8x8xf32>
    %cst_28 = arith.constant dense<0.000000e+00> : vector<1x8xf32>
    %62 = vector.multi_reduction <add>, %61, %cst_28 [2] : vector<1x8x8xf32> to vector<1x8xf32>
    %63 = vector.shape_cast %62 : vector<1x8xf32> to vector<1x8x1xf32>
    %64 = tpu.reciprocal %63 {approx = true} : vector<1x8x1xf32> -> vector<1x8x1xf32>
    %65 = vector.broadcast %64 : vector<1x8x1xf32> to vector<1x8x8xf32>
    %66 = arith.mulf %61, %65 : vector<1x8x8xf32>
    %67 = arith.truncf %66 : vector<1x8x8xf32> to vector<1x8x8xbf16>
    %c0_29 = arith.constant 0 : index
    %c0_30 = arith.constant 0 : index
    %c0_31 = arith.constant 0 : index
    %c8 = arith.constant 8 : index
    %68 = vector.load %arg13[%c0_29, %c0_30, %c0_31, %c8] : memref<1x1x8x32xbf16, #tpu.memory_space<vmem>>, vector<1x1x8x8xbf16>
    %69 = vector.shape_cast %68 : vector<1x1x8x8xbf16> to vector<1x8x8xbf16>
    %70 = vector.shape_cast %67 : vector<1x8x8xbf16> to vector<1x1x8x8xbf16>
    tpu.vector_store %arg13[%c0_29, %c0_30, %c0_31, %c8], %70 {strides = array<i32>} : memref<1x1x8x32xbf16, #tpu.memory_space<vmem>>, vector<1x1x8x8xbf16>,
    "tpu.trace_start"() <{level = 10 : i32, message = "bqk,bkd->bqd"}> : () -> ()
    %cst_32 = arith.constant dense<0.000000e+00> : vector<1x8x8xf32>
    %71 = tpu.matmul %67, %51, %cst_32 {dimension_numbers = #tpu.dot_dimension_numbers<[2], [1], [1], [2], [0, 0, 0, 1, 1, 2], [0], [0]>} : vector<1x8x8xbf16>, vector<1x8x8xbf16>, vector<1x8x8xf32> -> vector<1x8x8xf32>
    "tpu.trace_stop"() : () -> ()
    %72 = vector.shape_cast %71 : vector<1x8x8xf32> to vector<8x8xf32>
    %73 = arith.truncf %72 : vector<8x8xf32> to vector<8x8xbf16>
    %c0_33 = arith.constant 0 : index
    %c8_34 = arith.constant 8 : index
    %c0_35 = arith.constant 0 : index
    %74 = vector.load %arg6[%c0_33, %c8_34, %c0_35] : memref<1x32x32xbf16, #tpu.memory_space<vmem>>, vector<1x8x32xbf16>
    %75 = vector.shape_cast %74 : vector<1x8x32xbf16> to vector<8x32xbf16>
    %cst_36 = arith.constant dense<0.000000e+00> : vector<8x32xf32>
    %76 = tpu.matmul %73, %75, %cst_36 {dimension_numbers = #tpu.dot_dimension_numbers<[1], [0], [0], [1], [0, 0, 1, 1], [], []>} : vector<8x8xbf16>, vector<8x32xbf16>, vector<8x32xf32> -> vector<8x32xf32>
    %77 = arith.addf %48, %76 : vector<8x32xf32>
    %78 = vector.extract_strided_slice %13 {offsets = [0, 0, 16], sizes = [1, 8, 8], strides = [1, 1, 1]} : vector<1x8x32xbf16> to vector<1x8x8xbf16>
    %79 = vector.extract_strided_slice %15 {offsets = [0, 0, 16], sizes = [1, 8, 8], strides = [1, 1, 1]} : vector<1x8x32xbf16> to vector<1x8x8xbf16>
    %80 = vector.extract_strided_slice %17 {offsets = [0, 0, 16], sizes = [1, 8, 8], strides = [1, 1, 1]} : vector<1x8x32xbf16> to vector<1x8x8xbf16>
    "tpu.trace_start"() <{level = 10 : i32, message = "bqd,bkd->bqk"}> : () -> ()
    %cst_37 = arith.constant dense<0.000000e+00> : vector<1x8x8xf32>
    %81 = tpu.matmul %78, %79, %cst_37 {dimension_numbers = #tpu.dot_dimension_numbers<[2], [2], [1], [1], [0, 0, 0, 1, 1, 1], [0], [0]>} : vector<1x8x8xbf16>, vector<1x8x8xbf16>, vector<1x8x8xf32> -> vector<1x8x8xf32>
    "tpu.trace_stop"() : () -> ()
    %cst_38 = arith.constant 0.353553385 : f32
    %82 = vector.broadcast %cst_38 : f32 to vector<1x8x8xf32>
    %83 = arith.mulf %81, %82 : vector<1x8x8xf32>
    %84 = vector.broadcast %18 : vector<1x1x8xf32> to vector<1x8x8xf32>
    %85 = arith.addf %83, %84 : vector<1x8x8xf32>
    %cst_39 = arith.constant dense<0xFF800000> : vector<1x8xf32>
    %86 = vector.multi_reduction <maximumf>, %85, %cst_39 [2] : vector<1x8x8xf32> to vector<1x8xf32>
    %87 = vector.shape_cast %86 : vector<1x8xf32> to vector<1x8x1xf32>
    %88 = vector.broadcast %87 : vector<1x8x1xf32> to vector<1x8x8xf32>
    %89 = arith.subf %85, %88 : vector<1x8x8xf32>
    %90 = math.exp %89 : vector<1x8x8xf32>
    %cst_40 = arith.constant dense<0.000000e+00> : vector<1x8xf32>
    %91 = vector.multi_reduction <add>, %90, %cst_40 [2] : vector<1x8x8xf32> to vector<1x8xf32>
    %92 = vector.shape_cast %91 : vector<1x8xf32> to vector<1x8x1xf32>
    %93 = tpu.reciprocal %92 {approx = true} : vector<1x8x1xf32> -> vector<1x8x1xf32>
    %94 = vector.broadcast %93 : vector<1x8x1xf32> to vector<1x8x8xf32>
    %95 = arith.mulf %90, %94 : vector<1x8x8xf32>
    %96 = arith.truncf %95 : vector<1x8x8xf32> to vector<1x8x8xbf16>
    %c0_41 = arith.constant 0 : index
    %c0_42 = arith.constant 0 : index
    %c0_43 = arith.constant 0 : index
    %c16 = arith.constant 16 : index
    %97 = vector.load %arg13[%c0_41, %c0_42, %c0_43, %c16] : memref<1x1x8x32xbf16, #tpu.memory_space<vmem>>, vector<1x1x8x8xbf16>
    %98 = vector.shape_cast %97 : vector<1x1x8x8xbf16> to vector<1x8x8xbf16>
    %99 = vector.shape_cast %96 : vector<1x8x8xbf16> to vector<1x1x8x8xbf16>
    tpu.vector_store %arg13[%c0_41, %c0_42, %c0_43, %c16], %99 {strides = array<i32>} : memref<1x1x8x32xbf16, #tpu.memory_space<vmem>>, vector<1x1x8x8xbf16>,
    "tpu.trace_start"() <{level = 10 : i32, message = "bqk,bkd->bqd"}> : () -> ()
    %cst_44 = arith.constant dense<0.000000e+00> : vector<1x8x8xf32>
    %100 = tpu.matmul %96, %80, %cst_44 {dimension_numbers = #tpu.dot_dimension_numbers<[2], [1], [1], [2], [0, 0, 0, 1, 1, 2], [0], [0]>} : vector<1x8x8xbf16>, vector<1x8x8xbf16>, vector<1x8x8xf32> -> vector<1x8x8xf32>
    "tpu.trace_stop"() : () -> ()
    %101 = vector.shape_cast %100 : vector<1x8x8xf32> to vector<8x8xf32>
    %102 = arith.truncf %101 : vector<8x8xf32> to vector<8x8xbf16>
    %c0_45 = arith.constant 0 : index
    %c16_46 = arith.constant 16 : index
    %c0_47 = arith.constant 0 : index
    %103 = vector.load %arg6[%c0_45, %c16_46, %c0_47] : memref<1x32x32xbf16, #tpu.memory_space<vmem>>, vector<1x8x32xbf16>
    %104 = vector.shape_cast %103 : vector<1x8x32xbf16> to vector<8x32xbf16>
    %cst_48 = arith.constant dense<0.000000e+00> : vector<8x32xf32>
    %105 = tpu.matmul %102, %104, %cst_48 {dimension_numbers = #tpu.dot_dimension_numbers<[1], [0], [0], [1], [0, 0, 1, 1], [], []>} : vector<8x8xbf16>, vector<8x32xbf16>, vector<8x32xf32> -> vector<8x32xf32>
    %106 = arith.addf %77, %105 : vector<8x32xf32>
    %107 = vector.extract_strided_slice %13 {offsets = [0, 0, 24], sizes = [1, 8, 8], strides = [1, 1, 1]} : vector<1x8x32xbf16> to vector<1x8x8xbf16>
    %108 = vector.extract_strided_slice %15 {offsets = [0, 0, 24], sizes = [1, 8, 8], strides = [1, 1, 1]} : vector<1x8x32xbf16> to vector<1x8x8xbf16>
    %109 = vector.extract_strided_slice %17 {offsets = [0, 0, 24], sizes = [1, 8, 8], strides = [1, 1, 1]} : vector<1x8x32xbf16> to vector<1x8x8xbf16>
    "tpu.trace_start"() <{level = 10 : i32, message = "bqd,bkd->bqk"}> : () -> ()
    %cst_49 = arith.constant dense<0.000000e+00> : vector<1x8x8xf32>
    %110 = tpu.matmul %107, %108, %cst_49 {dimension_numbers = #tpu.dot_dimension_numbers<[2], [2], [1], [1], [0, 0, 0, 1, 1, 1], [0], [0]>} : vector<1x8x8xbf16>, vector<1x8x8xbf16>, vector<1x8x8xf32> -> vector<1x8x8xf32>
    "tpu.trace_stop"() : () -> ()
    %cst_50 = arith.constant 0.353553385 : f32
    %111 = vector.broadcast %cst_50 : f32 to vector<1x8x8xf32>
    %112 = arith.mulf %110, %111 : vector<1x8x8xf32>
    %113 = vector.broadcast %18 : vector<1x1x8xf32> to vector<1x8x8xf32>
    %114 = arith.addf %112, %113 : vector<1x8x8xf32>
    %cst_51 = arith.constant dense<0xFF800000> : vector<1x8xf32>
    %115 = vector.multi_reduction <maximumf>, %114, %cst_51 [2] : vector<1x8x8xf32> to vector<1x8xf32>
    %116 = vector.shape_cast %115 : vector<1x8xf32> to vector<1x8x1xf32>
    %117 = vector.broadcast %116 : vector<1x8x1xf32> to vector<1x8x8xf32>
    %118 = arith.subf %114, %117 : vector<1x8x8xf32>
    %119 = math.exp %118 : vector<1x8x8xf32>
    %cst_52 = arith.constant dense<0.000000e+00> : vector<1x8xf32>
    %120 = vector.multi_reduction <add>, %119, %cst_52 [2] : vector<1x8x8xf32> to vector<1x8xf32>
    %121 = vector.shape_cast %120 : vector<1x8xf32> to vector<1x8x1xf32>
    %122 = tpu.reciprocal %121 {approx = true} : vector<1x8x1xf32> -> vector<1x8x1xf32>
    %123 = vector.broadcast %122 : vector<1x8x1xf32> to vector<1x8x8xf32>
    %124 = arith.mulf %119, %123 : vector<1x8x8xf32>
    %125 = arith.truncf %124 : vector<1x8x8xf32> to vector<1x8x8xbf16>
    %c0_53 = arith.constant 0 : index
    %c0_54 = arith.constant 0 : index
    %c0_55 = arith.constant 0 : index
    %c24 = arith.constant 24 : index
    %126 = vector.load %arg13[%c0_53, %c0_54, %c0_55, %c24] : memref<1x1x8x32xbf16, #tpu.memory_space<vmem>>, vector<1x1x8x8xbf16>
    %127 = vector.shape_cast %126 : vector<1x1x8x8xbf16> to vector<1x8x8xbf16>
    %128 = vector.shape_cast %125 : vector<1x8x8xbf16> to vector<1x1x8x8xbf16>
    tpu.vector_store %arg13[%c0_53, %c0_54, %c0_55, %c24], %128 {strides = array<i32>} : memref<1x1x8x32xbf16, #tpu.memory_space<vmem>>, vector<1x1x8x8xbf16>,
    "tpu.trace_start"() <{level = 10 : i32, message = "bqk,bkd->bqd"}> : () -> ()
    %cst_56 = arith.constant dense<0.000000e+00> : vector<1x8x8xf32>
    %129 = tpu.matmul %125, %109, %cst_56 {dimension_numbers = #tpu.dot_dimension_numbers<[2], [1], [1], [2], [0, 0, 0, 1, 1, 2], [0], [0]>} : vector<1x8x8xbf16>, vector<1x8x8xbf16>, vector<1x8x8xf32> -> vector<1x8x8xf32>
    "tpu.trace_stop"() : () -> ()
    %130 = vector.shape_cast %129 : vector<1x8x8xf32> to vector<8x8xf32>
    %131 = arith.truncf %130 : vector<8x8xf32> to vector<8x8xbf16>
    %c0_57 = arith.constant 0 : index
    %c24_58 = arith.constant 24 : index
    %c0_59 = arith.constant 0 : index
    %132 = vector.load %arg6[%c0_57, %c24_58, %c0_59] : memref<1x32x32xbf16, #tpu.memory_space<vmem>>, vector<1x8x32xbf16>
    %133 = vector.shape_cast %132 : vector<1x8x32xbf16> to vector<8x32xbf16>
    %cst_60 = arith.constant dense<0.000000e+00> : vector<8x32xf32>
    %134 = tpu.matmul %131, %133, %cst_60 {dimension_numbers = #tpu.dot_dimension_numbers<[1], [0], [0], [1], [0, 0, 1, 1], [], []>} : vector<8x8xbf16>, vector<8x32xbf16>, vector<8x32xf32> -> vector<8x32xf32>
    %135 = arith.addf %106, %134 : vector<8x32xf32>
    %c0_61 = arith.constant 0 : index
    %c0_62 = arith.constant 0 : index
    %c0_63 = arith.constant 0 : index
    %136 = vector.load %arg7[%c0_61, %c0_62, %c0_63] : memref<1x1x32xf32, #tpu.memory_space<vmem>>, vector<1x1x32xf32>
    %137 = vector.shape_cast %136 : vector<1x1x32xf32> to vector<1x32xf32>
    %138 = vector.broadcast %137 : vector<1x32xf32> to vector<8x32xf32>
    %139 = arith.addf %135, %138 : vector<8x32xf32>
    %140 = arith.truncf %139 : vector<8x32xf32> to vector<8x32xbf16>
    %c0_64 = arith.constant 0 : index
    %c0_65 = arith.constant 0 : index
    %c0_66 = arith.constant 0 : index
    %141 = vector.load %arg8[%c0_64, %c0_65, %c0_66] : memref<1x32x64xbf16, #tpu.memory_space<vmem>>, vector<1x32x64xbf16>
    %142 = vector.shape_cast %141 : vector<1x32x64xbf16> to vector<32x64xbf16>
    %cst_67 = arith.constant dense<0.000000e+00> : vector<8x64xf32>
    %143 = tpu.matmul %140, %142, %cst_67 {dimension_numbers = #tpu.dot_dimension_numbers<[1], [0], [0], [1], [0, 0, 1, 1], [], []>} : vector<8x32xbf16>, vector<32x64xbf16>, vector<8x64xf32> -> vector<8x64xf32>
    %c0_68 = arith.constant 0 : index
    %c0_69 = arith.constant 0 : index
    %c0_70 = arith.constant 0 : index
    %144 = vector.load %arg9[%c0_68, %c0_69, %c0_70] : memref<1x1x64xf32, #tpu.memory_space<vmem>>, vector<1x1x64xf32>
    %145 = vector.shape_cast %144 : vector<1x1x64xf32> to vector<1x64xf32>
    %146 = vector.broadcast %145 : vector<1x64xf32> to vector<8x64xf32>
    %147 = arith.addf %143, %146 : vector<8x64xf32>
    %cst_71 = arith.constant 0.000000e+00 : f32
    %148 = vector.broadcast %cst_71 : f32 to vector<8x64xf32>
    %149 = arith.maximumf %147, %148 : vector<8x64xf32>
    %150 = arith.truncf %149 : vector<8x64xf32> to vector<8x64xbf16>
    %c0_72 = arith.constant 0 : index
    %c0_73 = arith.constant 0 : index
    %c0_74 = arith.constant 0 : index
    %151 = vector.load %arg10[%c0_72, %c0_73, %c0_74] : memref<1x64x32xbf16, #tpu.memory_space<vmem>>, vector<1x64x32xbf16>
    %152 = vector.shape_cast %151 : vector<1x64x32xbf16> to vector<64x32xbf16>
    %cst_75 = arith.constant dense<0.000000e+00> : vector<8x32xf32>
    %153 = tpu.matmul %150, %152, %cst_75 {dimension_numbers = #tpu.dot_dimension_numbers<[1], [0], [0], [1], [0, 0, 1, 1], [], []>} : vector<8x64xbf16>, vector<64x32xbf16>, vector<8x32xf32> -> vector<8x32xf32>
    %c0_76 = arith.constant 0 : index
    %c0_77 = arith.constant 0 : index
    %c0_78 = arith.constant 0 : index
    %154 = vector.load %arg11[%c0_76, %c0_77, %c0_78] : memref<1x1x32xf32, #tpu.memory_space<vmem>>, vector<1x1x32xf32>
    %155 = vector.shape_cast %154 : vector<1x1x32xf32> to vector<1x32xf32>
    %156 = vector.broadcast %155 : vector<1x32xf32> to vector<8x32xf32>
    %157 = arith.addf %153, %156 : vector<8x32xf32>
    %158 = arith.truncf %157 : vector<8x32xf32> to vector<8x32xbf16>
    %c0_79 = arith.constant 0 : index
    %c0_80 = arith.constant 0 : index
    %159 = vector.load %arg12[%c0_79, %c0_80] : memref<8x32xbf16, #tpu.memory_space<vmem>>, vector<8x32xbf16>
    tpu.vector_store %arg12[%c0_79, %c0_80], %158 {strides = array<i32>} : memref<8x32xbf16, #tpu.memory_space<vmem>>, vector<8x32xbf16>,
    return
  }
  func.func @transform_0(%arg0: i32, %arg1: i32) -> (i32, i32) {
    %c0_i32 = arith.constant 0 : i32
    %c0_i32_0 = arith.constant 0 : i32
    return %arg0, %c0_i32 : i32, i32
  }
  func.func @transform_1(%arg0: i32, %arg1: i32) -> (i32, i32, i32) {
    %c0_i32 = arith.constant 0 : i32
    %c0_i32_0 = arith.constant 0 : i32
    %c0_i32_1 = arith.constant 0 : i32
    return %arg0, %c0_i32, %c0_i32_0 : i32, i32, i32
  }
  func.func @transform_2(%arg0: i32, %arg1: i32) -> (i32, i32, i32) {
    %c0_i32 = arith.constant 0 : i32
    %c0_i32_0 = arith.constant 0 : i32
    %c0_i32_1 = arith.constant 0 : i32
    return %arg1, %c0_i32, %c0_i32_0 : i32, i32, i32
  }
  func.func @transform_3(%arg0: i32, %arg1: i32) -> (i32, i32, i32) {
    %c0_i32 = arith.constant 0 : i32
    %c0_i32_0 = arith.constant 0 : i32
    %c0_i32_1 = arith.constant 0 : i32
    return %arg1, %c0_i32, %c0_i32_0 : i32, i32, i32
  }
  func.func @transform_4(%arg0: i32, %arg1: i32) -> (i32, i32, i32) {
    %c0_i32 = arith.constant 0 : i32
    %c0_i32_0 = arith.constant 0 : i32
    %c0_i32_1 = arith.constant 0 : i32
    return %arg1, %c0_i32, %c0_i32_0 : i32, i32, i32
  }
  func.func @transform_5(%arg0: i32, %arg1: i32) -> (i32, i32, i32) {
    %c0_i32 = arith.constant 0 : i32
    %c0_i32_0 = arith.constant 0 : i32
    %c0_i32_1 = arith.constant 0 : i32
    return %arg1, %c0_i32, %c0_i32_0 : i32, i32, i32
  }
  func.func @transform_6(%arg0: i32, %arg1: i32) -> (i32, i32, i32) {
    %c0_i32 = arith.constant 0 : i32
    %c0_i32_0 = arith.constant 0 : i32
    %c0_i32_1 = arith.constant 0 : i32
    return %arg1, %c0_i32, %c0_i32_0 : i32, i32, i32
  }
  func.func @transform_7(%arg0: i32, %arg1: i32) -> (i32, i32, i32) {
    %c0_i32 = arith.constant 0 : i32
    %c0_i32_0 = arith.constant 0 : i32
    %c0_i32_1 = arith.constant 0 : i32
    return %arg1, %c0_i32, %c0_i32_0 : i32, i32, i32
  }
  func.func @transform_8(%arg0: i32, %arg1: i32) -> (i32, i32, i32) {
    %c0_i32 = arith.constant 0 : i32
    %c0_i32_0 = arith.constant 0 : i32
    %c0_i32_1 = arith.constant 0 : i32
    return %arg1, %c0_i32, %c0_i32_0 : i32, i32, i32
  }
  func.func @transform_9(%arg0: i32, %arg1: i32) -> (i32, i32, i32) {
    %c0_i32 = arith.constant 0 : i32
    %c0_i32_0 = arith.constant 0 : i32
    %c0_i32_1 = arith.constant 0 : i32
    return %arg1, %c0_i32, %c0_i32_0 : i32, i32, i32
  }
  func.func @transform_10(%arg0: i32, %arg1: i32) -> (i32, i32) {
    %c0_i32 = arith.constant 0 : i32
    %c0_i32_0 = arith.constant 0 : i32
    return %arg0, %c0_i32 : i32, i32
  }
  func.func @transform_11(%arg0: i32, %arg1: i32) -> (i32, i32, i32, i32) {
    %c0_i32 = arith.constant 0 : i32
    %c0_i32_0 = arith.constant 0 : i32
    %c0_i32_1 = arith.constant 0 : i32
    return %arg1, %arg0, %c0_i32, %c0_i32_0 : i32, i32, i32, i32
  }
}

</mosaic_0001>

<llo_original>
// kernel: tpu_custom_call.1
$region0: #{tpu_custom_call.1}
  #allocation0 [shape = 'u32[]', space=smem, size = 0x4, offset = 0x4, fixed_abs, tag = 'smem constant byte address 0x4 - core index']
  #allocation1 [shape = 'u32[144,128]{1,0:T(1,128)}', space=vmem, size = 0x12000, scoped, tag = 'internal scratch']
  %s0 = inlined_call_operand.hbm [shape: bf16[16,32], index: 0, kind: input, shape index: {}]
  %s1 = inlined_call_operand.hbm [shape: f32[2,1,8], index: 1, kind: input, shape index: {}]
  %s2 = inlined_call_operand.vmem [shape: bf16[2,32,96], index: 2, kind: input, shape index: {}]
  %s3 = inlined_call_operand.vmem [shape: f32[2,1,96], index: 3, kind: input, shape index: {}]
  %s4 = inlined_call_operand.vmem [shape: bf16[2,32,32], index: 4, kind: input, shape index: {}]
  %s5 = inlined_call_operand.vmem [shape: f32[2,1,32], index: 5, kind: input, shape index: {}]
  %s6 = inlined_call_operand.vmem [shape: bf16[2,32,64], index: 6, kind: input, shape index: {}]
  %s7 = inlined_call_operand.vmem [shape: f32[2,1,64], index: 7, kind: input, shape index: {}]
  %s8 = inlined_call_operand.vmem [shape: bf16[2,64,32], index: 8, kind: input, shape index: {}]
  %s9 = inlined_call_operand.vmem [shape: f32[2,1,32], index: 9, kind: input, shape index: {}]
  %s10 = inlined_call_operand.hbm [shape: bf16[16,32], index: 10, kind: output, shape index: {0}]
  %s11 = inlined_call_operand.hbm [shape: bf16[2,2,8,32], index: 11, kind: output, shape index: {1}]
  %12 = xla_tuple %s10, %s11
  %s13 = sld [smem:[#allocation0]]
  $region93: #{tpu_custom_call.1} parent=0
    _
  %s15 = ssub.s32 1, %s13
  %s16 = scalar_select 0, %s15, %s13
  $region1: #{tpu_custom_call.1} parent=0
    #allocation2 [shape = 'u8[4096]{0}', space=vmem, size = 0x1000, scoped, tag = 'input window, operand 0']
    #allocation3 [shape = 's32[2]{0}', space=sflag, size = 0x8, scoped, tag = 'scoped memory for tpu_custom_call.1']
    #allocation4 [shape = 's32[2]{0}', space=sflag, size = 0x8, scoped, tag = 'scoped memory for tpu_custom_call.1']
    #allocation5 [shape = 'u8[1024]{0}', space=vmem, size = 0x400, scoped, tag = 'input window, operand 1']
    #allocation6 [shape = 's32[2]{0}', space=sflag, size = 0x8, scoped, tag = 'scoped memory for tpu_custom_call.1']
    #allocation7 [shape = 'u8[4096]{0}', space=vmem, size = 0x1000, scoped, tag = 'output window, operand 0']
    #allocation8 [shape = 'u8[4096]{0}', space=vmem, size = 0x1000, scoped, tag = 'output window, operand 1']
    #allocation9 [shape = 's32[2]{0}', space=sflag, size = 0x8, scoped, tag = 'scoped memory for tpu_custom_call.1']
    %17 = vsyncpa [#allocation3], 0
    %s18 = scalar_lea.sflag [#allocation3], 1
    %19 = vsyncpa %s18, 0
    %20 = vsyncpa [#allocation6], 0
    %s21 = scalar_lea.sflag [#allocation6], 1
    %22 = vsyncpa %s21, 0
    %23 = vsyncpa [#allocation4], 0
    %s24 = scalar_lea.sflag [#allocation4], 1
    %25 = vsyncpa %s24, 0
    %26 = vsyncpa [#allocation9], 0
    %s27 = scalar_lea.sflag [#allocation9], 1
    %28 = vsyncpa %s27, 0
    loop: start=0, step=1, limit=6
    $region2: #{tpu_custom_call.1} parent=1 // loop_pre_header
      _
    $region3: #{tpu_custom_call.1} parent=1 // loop_header
      %s30 = sphi 0, %s34
      %p31 = scmp.ge.s32.totalorder %s30, 6
      %s37 = sphi 0, %s49
      %s38 = sphi 0, %s45
      %s39 = sphi 0, %s37
      %s40 = sphi 0, %s38
      %s41 = sphi 0, %s39
      %s42 = sphi 0, %s40
      %s52 = sphi 0, %s54
      %s55 = sphi 0, %s52
      %s56 = sphi 0, %s55
      %s72 = sphi 0, %s56
      %s78 = sphi 0, %s80
      %s81 = sphi 0, %s78
      %s82 = sphi 0, %s81
      %s98 = sphi 0, %s82
      %s104 = sphi 0, %s106
      %s107 = sphi 0, %s104
      %s108 = sphi 0, %s107
      %s124 = sphi 0, %s108
      %s130 = sphi 0, %s132
      %s133 = sphi 0, %s130
      %s134 = sphi 0, %s133
      %s150 = sphi 0, %s134
      %s156 = sphi 0, %s158
      %s159 = sphi 0, %s156
      %s160 = sphi 0, %s159
      %s176 = sphi 0, %s160
      %s182 = sphi 0, %s184
      %s185 = sphi 0, %s182
      %s186 = sphi 0, %s185
      %s202 = sphi 0, %s186
      %s208 = sphi 0, %s210
      %s211 = sphi 0, %s208
      %s212 = sphi 0, %s211
      %s228 = sphi 0, %s212
      %s234 = sphi 0, %s236
      %s237 = sphi 0, %s234
      %s238 = sphi 0, %s237
      %s254 = sphi 0, %s238
      %s260 = sphi 0, %s262
      %s263 = sphi 0, %s260
      %s264 = sphi 0, %s263
      %s280 = sphi 0, %s264
      %s286 = sphi 0, %s288
      %s289 = sphi 0, %s286
      %s290 = sphi 0, %s289
      %s306 = sphi 0, %s290
      %s312 = sphi 0, %s314
      %s315 = sphi 0, %s312
      %s316 = sphi 0, %s315
      %s332 = sphi 0, %s316
      %s340 = sphi 0, %s342
      %s343 = sphi 0, %s340
      %s344 = sphi 0, %s343
      %s360 = sphi 0, %s344
    $region4: #{tpu_custom_call.1} parent=1 // loop_header_branch
      %33 = sbr.rel (%p31) target = $region8
    $region5: #{tpu_custom_call.1} parent=1 // loop_body
      %s35 = ssub.s32 %s30, 1
      %s36 = ssub.s32 %s30, 2
      %s43 = sadd.s32 1, %s38
      %p44 = scmp.ge.s32.totalorder %s43, 2
      %s45 = scalar_select %p44, 0, %s43
      %s46 = sadd.s32 1, %s37
      %s47 = scalar_select %p44, %s46, %s37
      %p48 = scmp.ge.s32.totalorder %s47, 2
      %s49 = scalar_select %p48, 0, %s47
      %s50 = ssub.s32 %s37, %s49
      %p51 = scmp.eq.s32.totalorder %s50, 0
      %s53 = sadd.s32 %s52, 1
      %s54 = scalar_select %p51, %s52, %s53
      %p57 = pneg %p51
      %p58 = scmp.eq.s32.totalorder %s30, 3
      %p59 = por %p57, %p58
      %p60 = scmp.ne.s32.totalorder %s52, %s55
      %p61 = scmp.eq.s32.totalorder %s30, 0
      %p62 = por %p60, %p61
      %p63 = scmp.ne.s32.totalorder %s52, %s55
      %p64 = scmp.eq.s32.totalorder %s35, 3
      %p65 = por %p63, %p64
      %p66 = scmp.ne.s32.totalorder %s55, %s56
      %p67 = scmp.eq.s32.totalorder %s35, 0
      %p68 = por %p66, %p67
      %p69 = scmp.ne.s32.totalorder %s55, %s56
      %p70 = scmp.eq.s32.totalorder %s36, 3
      %p71 = por %p69, %p70
      %p73 = scmp.ne.s32.totalorder %s56, %s72
      %p74 = scmp.eq.s32.totalorder %s36, 0
      %p75 = por %p73, %p74
      %s76 = ssub.s32 %s37, %s49
      %p77 = scmp.eq.s32.totalorder %s76, 0
      %s79 = sadd.s32 %s78, 1
      %s80 = scalar_select %p77, %s78, %s79
      %p83 = pneg %p77
      %p84 = scmp.eq.s32.totalorder %s30, 3
      %p85 = por %p83, %p84
      %p86 = scmp.ne.s32.totalorder %s78, %s81
      %p87 = scmp.eq.s32.totalorder %s30, 0
      %p88 = por %p86, %p87
      %p89 = scmp.ne.s32.totalorder %s78, %s81
      %p90 = scmp.eq.s32.totalorder %s35, 3
      %p91 = por %p89, %p90
      %p92 = scmp.ne.s32.totalorder %s81, %s82
      %p93 = scmp.eq.s32.totalorder %s35, 0
      %p94 = por %p92, %p93
      %p95 = scmp.ne.s32.totalorder %s81, %s82
      %p96 = scmp.eq.s32.totalorder %s36, 3
      %p97 = por %p95, %p96
      %p99 = scmp.ne.s32.totalorder %s82, %s98
      %p100 = scmp.eq.s32.totalorder %s36, 0
      %p101 = por %p99, %p100
      %s102 = ssub.s32 %s38, %s45
      %p103 = scmp.eq.s32.totalorder %s102, 0
      %s105 = sadd.s32 %s104, 1
      %s106 = scalar_select %p103, %s104, %s105
      %p109 = pneg %p103
      %p110 = scmp.eq.s32.totalorder %s30, 3
      %p111 = por %p109, %p110
      %p112 = scmp.ne.s32.totalorder %s104, %s107
      %p113 = scmp.eq.s32.totalorder %s30, 0
      %p114 = por %p112, %p113
      %p115 = scmp.ne.s32.totalorder %s104, %s107
      %p116 = scmp.eq.s32.totalorder %s35, 3
      %p117 = por %p115, %p116
      %p118 = scmp.ne.s32.totalorder %s107, %s108
      %p119 = scmp.eq.s32.totalorder %s35, 0
      %p120 = por %p118, %p119
      %p121 = scmp.ne.s32.totalorder %s107, %s108
      %p122 = scmp.eq.s32.totalorder %s36, 3
      %p123 = por %p121, %p122
      %p125 = scmp.ne.s32.totalorder %s108, %s124
      %p126 = scmp.eq.s32.totalorder %s36, 0
      %p127 = por %p125, %p126
      %s128 = ssub.s32 %s38, %s45
      %p129 = scmp.eq.s32.totalorder %s128, 0
      %s131 = sadd.s32 %s130, 1
      %s132 = scalar_select %p129, %s130, %s131
      %p135 = pneg %p129
      %p136 = scmp.eq.s32.totalorder %s30, 3
      %p137 = por %p135, %p136
      %p138 = scmp.ne.s32.totalorder %s130, %s133
      %p139 = scmp.eq.s32.totalorder %s30, 0
      %p140 = por %p138, %p139
      %p141 = scmp.ne.s32.totalorder %s130, %s133
      %p142 = scmp.eq.s32.totalorder %s35, 3
      %p143 = por %p141, %p142
      %p144 = scmp.ne.s32.totalorder %s133, %s134
      %p145 = scmp.eq.s32.totalorder %s35, 0
      %p146 = por %p144, %p145
      %p147 = scmp.ne.s32.totalorder %s133, %s134
      %p148 = scmp.eq.s32.totalorder %s36, 3
      %p149 = por %p147, %p148
      %p151 = scmp.ne.s32.totalorder %s134, %s150
      %p152 = scmp.eq.s32.totalorder %s36, 0
      %p153 = por %p151, %p152
      %s154 = ssub.s32 %s38, %s45
      %p155 = scmp.eq.s32.totalorder %s154, 0
      %s157 = sadd.s32 %s156, 1
      %s158 = scalar_select %p155, %s156, %s157
      %p161 = pneg %p155
      %p162 = scmp.eq.s32.totalorder %s30, 3
      %p163 = por %p161, %p162
      %p164 = scmp.ne.s32.totalorder %s156, %s159
      %p165 = scmp.eq.s32.totalorder %s30, 0
      %p166 = por %p164, %p165
      %p167 = scmp.ne.s32.totalorder %s156, %s159
      %p168 = scmp.eq.s32.totalorder %s35, 3
      %p169 = por %p167, %p168
      %p170 = scmp.ne.s32.totalorder %s159, %s160
      %p171 = scmp.eq.s32.totalorder %s35, 0
      %p172 = por %p170, %p171
      %p173 = scmp.ne.s32.totalorder %s159, %s160
      %p174 = scmp.eq.s32.totalorder %s36, 3
      %p175 = por %p173, %p174
      %p177 = scmp.ne.s32.totalorder %s160, %s176
      %p178 = scmp.eq.s32.totalorder %s36, 0
      %p179 = por %p177, %p178
      %s180 = ssub.s32 %s38, %s45
      %p181 = scmp.eq.s32.totalorder %s180, 0
      %s183 = sadd.s32 %s182, 1
      %s184 = scalar_select %p181, %s182, %s183
      %p187 = pneg %p181
      %p188 = scmp.eq.s32.totalorder %s30, 3
      %p189 = por %p187, %p188
      %p190 = scmp.ne.s32.totalorder %s182, %s185
      %p191 = scmp.eq.s32.totalorder %s30, 0
      %p192 = por %p190, %p191
      %p193 = scmp.ne.s32.totalorder %s182, %s185
      %p194 = scmp.eq.s32.totalorder %s35, 3
      %p195 = por %p193, %p194
      %p196 = scmp.ne.s32.totalorder %s185, %s186
      %p197 = scmp.eq.s32.totalorder %s35, 0
      %p198 = por %p196, %p197
      %p199 = scmp.ne.s32.totalorder %s185, %s186
      %p200 = scmp.eq.s32.totalorder %s36, 3
      %p201 = por %p199, %p200
      %p203 = scmp.ne.s32.totalorder %s186, %s202
      %p204 = scmp.eq.s32.totalorder %s36, 0
      %p205 = por %p203, %p204
      %s206 = ssub.s32 %s38, %s45
      %p207 = scmp.eq.s32.totalorder %s206, 0
      %s209 = sadd.s32 %s208, 1
      %s210 = scalar_select %p207, %s208, %s209
      %p213 = pneg %p207
      %p214 = scmp.eq.s32.totalorder %s30, 3
      %p215 = por %p213, %p214
      %p216 = scmp.ne.s32.totalorder %s208, %s211
      %p217 = scmp.eq.s32.totalorder %s30, 0
      %p218 = por %p216, %p217
      %p219 = scmp.ne.s32.totalorder %s208, %s211
      %p220 = scmp.eq.s32.totalorder %s35, 3
      %p221 = por %p219, %p220
      %p222 = scmp.ne.s32.totalorder %s211, %s212
      %p223 = scmp.eq.s32.totalorder %s35, 0
      %p224 = por %p222, %p223
      %p225 = scmp.ne.s32.totalorder %s211, %s212
      %p226 = scmp.eq.s32.totalorder %s36, 3
      %p227 = por %p225, %p226
      %p229 = scmp.ne.s32.totalorder %s212, %s228
      %p230 = scmp.eq.s32.totalorder %s36, 0
      %p231 = por %p229, %p230
      %s232 = ssub.s32 %s38, %s45
      %p233 = scmp.eq.s32.totalorder %s232, 0
      %s235 = sadd.s32 %s234, 1
      %s236 = scalar_select %p233, %s234, %s235
      %p239 = pneg %p233
      %p240 = scmp.eq.s32.totalorder %s30, 3
      %p241 = por %p239, %p240
      %p242 = scmp.ne.s32.totalorder %s234, %s237
      %p243 = scmp.eq.s32.totalorder %s30, 0
      %p244 = por %p242, %p243
      %p245 = scmp.ne.s32.totalorder %s234, %s237
      %p246 = scmp.eq.s32.totalorder %s35, 3
      %p247 = por %p245, %p246
      %p248 = scmp.ne.s32.totalorder %s237, %s238
      %p249 = scmp.eq.s32.totalorder %s35, 0
      %p250 = por %p248, %p249
      %p251 = scmp.ne.s32.totalorder %s237, %s238
      %p252 = scmp.eq.s32.totalorder %s36, 3
      %p253 = por %p251, %p252
      %p255 = scmp.ne.s32.totalorder %s238, %s254
      %p256 = scmp.eq.s32.totalorder %s36, 0
      %p257 = por %p255, %p256
      %s258 = ssub.s32 %s38, %s45
      %p259 = scmp.eq.s32.totalorder %s258, 0
      %s261 = sadd.s32 %s260, 1
      %s262 = scalar_select %p259, %s260, %s261
      %p265 = pneg %p259
      %p266 = scmp.eq.s32.totalorder %s30, 3
      %p267 = por %p265, %p266
      %p268 = scmp.ne.s32.totalorder %s260, %s263
      %p269 = scmp.eq.s32.totalorder %s30, 0
      %p270 = por %p268, %p269
      %p271 = scmp.ne.s32.totalorder %s260, %s263
      %p272 = scmp.eq.s32.totalorder %s35, 3
      %p273 = por %p271, %p272
      %p274 = scmp.ne.s32.totalorder %s263, %s264
      %p275 = scmp.eq.s32.totalorder %s35, 0
      %p276 = por %p274, %p275
      %p277 = scmp.ne.s32.totalorder %s263, %s264
      %p278 = scmp.eq.s32.totalorder %s36, 3
      %p279 = por %p277, %p278
      %p281 = scmp.ne.s32.totalorder %s264, %s280
      %p282 = scmp.eq.s32.totalorder %s36, 0
      %p283 = por %p281, %p282
      %s284 = ssub.s32 %s38, %s45
      %p285 = scmp.eq.s32.totalorder %s284, 0
      %s287 = sadd.s32 %s286, 1
      %s288 = scalar_select %p285, %s286, %s287
      %p291 = pneg %p285
      %p292 = scmp.eq.s32.totalorder %s30, 3
      %p293 = por %p291, %p292
      %p294 = scmp.ne.s32.totalorder %s286, %s289
      %p295 = scmp.eq.s32.totalorder %s30, 0
      %p296 = por %p294, %p295
      %p297 = scmp.ne.s32.totalorder %s286, %s289
      %p298 = scmp.eq.s32.totalorder %s35, 3
      %p299 = por %p297, %p298
      %p300 = scmp.ne.s32.totalorder %s289, %s290
      %p301 = scmp.eq.s32.totalorder %s35, 0
      %p302 = por %p300, %p301
      %p303 = scmp.ne.s32.totalorder %s289, %s290
      %p304 = scmp.eq.s32.totalorder %s36, 3
      %p305 = por %p303, %p304
      %p307 = scmp.ne.s32.totalorder %s290, %s306
      %p308 = scmp.eq.s32.totalorder %s36, 0
      %p309 = por %p307, %p308
      %s310 = ssub.s32 %s37, %s49
      %p311 = scmp.eq.s32.totalorder %s310, 0
      %s313 = sadd.s32 %s312, 1
      %s314 = scalar_select %p311, %s312, %s313
      %p317 = pneg %p311
      %p318 = scmp.eq.s32.totalorder %s30, 3
      %p319 = por %p317, %p318
      %p320 = scmp.ne.s32.totalorder %s312, %s315
      %p321 = scmp.eq.s32.totalorder %s30, 0
      %p322 = por %p320, %p321
      %p323 = scmp.ne.s32.totalorder %s312, %s315
      %p324 = scmp.eq.s32.totalorder %s35, 3
      %p325 = por %p323, %p324
      %p326 = scmp.ne.s32.totalorder %s315, %s316
      %p327 = scmp.eq.s32.totalorder %s35, 0
      %p328 = por %p326, %p327
      %p329 = scmp.ne.s32.totalorder %s315, %s316
      %p330 = scmp.eq.s32.totalorder %s36, 3
      %p331 = por %p329, %p330
      %p333 = scmp.ne.s32.totalorder %s316, %s332
      %p334 = scmp.eq.s32.totalorder %s36, 0
      %p335 = por %p333, %p334
      %s336 = ssub.s32 %s38, %s45
      %s337 = ssub.s32 %s37, %s49
      %s338 = sor.u32 %s336, %s337
      %p339 = scmp.eq.s32.totalorder %s338, 0
      %s341 = sadd.s32 %s340, 1
      %s342 = scalar_select %p339, %s340, %s341
      %p345 = pneg %p339
      %p346 = scmp.eq.s32.totalorder %s30, 3
      %p347 = por %p345, %p346
      %p348 = scmp.ne.s32.totalorder %s340, %s343
      %p349 = scmp.eq.s32.totalorder %s30, 0
      %p350 = por %p348, %p349
      %p351 = scmp.ne.s32.totalorder %s340, %s343
      %p352 = scmp.eq.s32.totalorder %s35, 3
      %p353 = por %p351, %p352
      %p354 = scmp.ne.s32.totalorder %s343, %s344
      %p355 = scmp.eq.s32.totalorder %s35, 0
      %p356 = por %p354, %p355
      %p357 = scmp.ne.s32.totalorder %s343, %s344
      %p358 = scmp.eq.s32.totalorder %s36, 3
      %p359 = por %p357, %p358
      %p361 = scmp.ne.s32.totalorder %s344, %s360
      %p362 = scmp.eq.s32.totalorder %s36, 0
      %p363 = por %p361, %p362
      %p364 = scmp.le.s32.totalorder 1, %s30
      %p365 = scmp.lt.s32.totalorder %s30, 5
      %p366 = pnand %p364, %p365
      %p367 = pneg %p366
      // Predicated region
      $region9: #{tpu_custom_call.1} parent=5 // pred_check
        _
      $region10: #{tpu_custom_call.1} parent=5 // pred_check_branch
        %369 = sbr.rel (%p366) target = $region12
      $region11: #{tpu_custom_call.1} parent=5 // pred_region
        %s370 = ssub.s32 %s30, 1
      $region12: #{tpu_custom_call.1} parent=5 // pred_fallthru
        _
      %p371 = scmp.lt.s32.totalorder %s30, 4
      // Predicated region
      $region13: #{tpu_custom_call.1} parent=5 // pred_check
        %p372 = pneg %p371
      $region14: #{tpu_custom_call.1} parent=5 // pred_check_branch
        %374 = sbr.rel (%p372) target = $region16
      $region15: #{tpu_custom_call.1} parent=5 // pred_region
        // Predicated region
        $region17: #{tpu_custom_call.1} parent=15 // pred_check
          %p375 = pneg %p62
        $region18: #{tpu_custom_call.1} parent=15 // pred_check_branch
          %377 = sbr.rel (%p375) target = $region20
        $region19: #{tpu_custom_call.1} parent=15 // pred_region
          %s378 = sand.u32 %s52, 1
          %s379 = scalar_lea.sflag [#allocation3], %s378
          %s380 = sand.u32 %s52, 1
          %s381 = smul.addr %s380, 4
          %s382 = scalar_lea.vmem [#allocation2], %s381
          %s384 = ssub.s32 64, 64
          %385 = vsyncadd %s379, %s384
          %s386 = smul.addr %s37, 64
          %s387 = scalar_lea.hbm %s0, %s386
          %s389 = sshll.u32 %s382, 4
          %s390 = int_to_ptr.vmem [resolvable:$true] %s389
          %392 = dma.hbm_to_vmem [thread:$0]  %s387, 64, %s390, %s379
        $region20: #{tpu_custom_call.1} parent=15 // pred_fallthru
          _
        // Predicated region
        $region21: #{tpu_custom_call.1} parent=15 // pred_check
          %p393 = pneg %p88
        $region22: #{tpu_custom_call.1} parent=15 // pred_check_branch
          %395 = sbr.rel (%p393) target = $region24
        $region23: #{tpu_custom_call.1} parent=15 // pred_region
          %s396 = sand.u32 %s78, 1
          %s397 = scalar_lea.sflag [#allocation6], %s396
          %s398 = sand.u32 %s78, 1
          %s399 = scalar_lea.vmem [#allocation5], %s398
          %s401 = ssub.s32 16, 16
          %402 = vsyncadd %s397, %s401
          %s403 = smul.addr %s37, 16
          %s404 = scalar_lea.hbm %s1, %s403
          %s406 = sshll.u32 %s399, 4
          %s407 = int_to_ptr.vmem [resolvable:$true] %s406
          %409 = dma.hbm_to_vmem [thread:$0]  %s404, 16, %s407, %s397
        $region24: #{tpu_custom_call.1} parent=15 // pred_fallthru
          _
        // Predicated region
        $region25: #{tpu_custom_call.1} parent=15 // pred_check
          %p410 = pneg %p114
        $region26: #{tpu_custom_call.1} parent=15 // pred_check_branch
          %412 = sbr.rel (%p410) target = $region28
        $region27: #{tpu_custom_call.1} parent=15 // pred_region
          %p413 = scmp.lt.s32.totalorder %s38, 1
          %s414 = scalar_select %p413, %s38, 1
          %s415 = smul.addr %s414, 4
          %s416 = smul.addr %s415, 4
          %s417 = scalar_lea.vmem %s2, %s416
        $region28: #{tpu_custom_call.1} parent=15 // pred_fallthru
          _
        // Predicated region
        $region29: #{tpu_custom_call.1} parent=15 // pred_check
          %p418 = pneg %p140
        $region30: #{tpu_custom_call.1} parent=15 // pred_check_branch
          %420 = sbr.rel (%p418) target = $region32
        $region31: #{tpu_custom_call.1} parent=15 // pred_region
          %p421 = scmp.lt.s32.totalorder %s38, 1
          %s422 = scalar_select %p421, %s38, 1
          %s423 = scalar_lea.vmem %s3, %s422
        $region32: #{tpu_custom_call.1} parent=15 // pred_fallthru
          _
        // Predicated region
        $region33: #{tpu_custom_call.1} parent=15 // pred_check
          %p424 = pneg %p166
        $region34: #{tpu_custom_call.1} parent=15 // pred_check_branch
          %426 = sbr.rel (%p424) target = $region36
        $region35: #{tpu_custom_call.1} parent=15 // pred_region
          %p427 = scmp.lt.s32.totalorder %s38, 1
          %s428 = scalar_select %p427, %s38, 1
          %s429 = smul.addr %s428, 4
          %s430 = smul.addr %s429, 4
          %s431 = scalar_lea.vmem %s4, %s430
        $region36: #{tpu_custom_call.1} parent=15 // pred_fallthru
          _
        // Predicated region
        $region37: #{tpu_custom_call.1} parent=15 // pred_check
          %p432 = pneg %p192
        $region38: #{tpu_custom_call.1} parent=15 // pred_check_branch
          %434 = sbr.rel (%p432) target = $region40
        $region39: #{tpu_custom_call.1} parent=15 // pred_region
          %p435 = scmp.lt.s32.totalorder %s38, 1
          %s436 = scalar_select %p435, %s38, 1
          %s437 = scalar_lea.vmem %s5, %s436
        $region40: #{tpu_custom_call.1} parent=15 // pred_fallthru
          _
        // Predicated region
        $region41: #{tpu_custom_call.1} parent=15 // pred_check
          %p438 = pneg %p218
        $region42: #{tpu_custom_call.1} parent=15 // pred_check_branch
          %440 = sbr.rel (%p438) target = $region44
        $region43: #{tpu_custom_call.1} parent=15 // pred_region
          %p441 = scmp.lt.s32.totalorder %s38, 1
          %s442 = scalar_select %p441, %s38, 1
          %s443 = smul.addr %s442, 4
          %s444 = smul.addr %s443, 4
          %s445 = scalar_lea.vmem %s6, %s444
        $region44: #{tpu_custom_call.1} parent=15 // pred_fallthru
          _
        // Predicated region
        $region45: #{tpu_custom_call.1} parent=15 // pred_check
          %p446 = pneg %p244
        $region46: #{tpu_custom_call.1} parent=15 // pred_check_branch
          %448 = sbr.rel (%p446) target = $region48
        $region47: #{tpu_custom_call.1} parent=15 // pred_region
          %p449 = scmp.lt.s32.totalorder %s38, 1
          %s450 = scalar_select %p449, %s38, 1
          %s451 = scalar_lea.vmem %s7, %s450
        $region48: #{tpu_custom_call.1} parent=15 // pred_fallthru
          _
        // Predicated region
        $region49: #{tpu_custom_call.1} parent=15 // pred_check
          %p452 = pneg %p270
        $region50: #{tpu_custom_call.1} parent=15 // pred_check_branch
          %454 = sbr.rel (%p452) target = $region52
        $region51: #{tpu_custom_call.1} parent=15 // pred_region
          %p455 = scmp.lt.s32.totalorder %s38, 1
          %s456 = scalar_select %p455, %s38, 1
          %s457 = smul.addr %s456, 8
          %s458 = smul.addr %s457, 4
          %s459 = scalar_lea.vmem %s8, %s458
        $region52: #{tpu_custom_call.1} parent=15 // pred_fallthru
          _
        // Predicated region
        $region53: #{tpu_custom_call.1} parent=15 // pred_check
          %p460 = pneg %p296
        $region54: #{tpu_custom_call.1} parent=15 // pred_check_branch
          %462 = sbr.rel (%p460) target = $region56
        $region55: #{tpu_custom_call.1} parent=15 // pred_region
          %p463 = scmp.lt.s32.totalorder %s38, 1
          %s464 = scalar_select %p463, %s38, 1
          %s465 = scalar_lea.vmem %s9, %s464
        $region56: #{tpu_custom_call.1} parent=15 // pred_fallthru
          _
      $region16: #{tpu_custom_call.1} parent=5 // pred_fallthru
        _
      %p466 = scmp.le.s32.totalorder 1, %s30
      %p467 = scmp.lt.s32.totalorder %s30, 5
      %p468 = pnand %p466, %p467
      %p469 = pneg %p468
      // Predicated region
      $region57: #{tpu_custom_call.1} parent=5 // pred_check
        _
      $region58: #{tpu_custom_call.1} parent=5 // pred_check_branch
        %471 = sbr.rel (%p468) target = $region60
      $region59: #{tpu_custom_call.1} parent=5 // pred_region
        %s472 = ssub.s32 %s30, 1
        %s473 = sand.u32 %s55, 1
        %s474 = scalar_lea.sflag [#allocation3], %s473
        %s475 = sand.u32 %s55, 1
        %s476 = smul.addr %s475, 4
        %s477 = scalar_lea.vmem [#allocation2], %s476
        // Predicated region
        $region61: #{tpu_custom_call.1} parent=59 // pred_check
          %p478 = pneg %p68
        $region62: #{tpu_custom_call.1} parent=59 // pred_check_branch
          %480 = sbr.rel (%p478) target = $region64
        $region63: #{tpu_custom_call.1} parent=59 // pred_region
          %481 = dma.done %s474, 64
        $region64: #{tpu_custom_call.1} parent=59 // pred_fallthru
          _
        %s482 = sand.u32 %s81, 1
        %s483 = scalar_lea.sflag [#allocation6], %s482
        %s484 = sand.u32 %s81, 1
        %s485 = scalar_lea.vmem [#allocation5], %s484
        // Predicated region
        $region65: #{tpu_custom_call.1} parent=59 // pred_check
          %p486 = pneg %p94
        $region66: #{tpu_custom_call.1} parent=59 // pred_check_branch
          %488 = sbr.rel (%p486) target = $region68
        $region67: #{tpu_custom_call.1} parent=59 // pred_region
          %489 = dma.done %s483, 16
        $region68: #{tpu_custom_call.1} parent=59 // pred_fallthru
          _
        %s490 = sand.u32 %s55, 1
        %s491 = scalar_lea.sflag [#allocation3], %s490
        %s492 = sand.u32 %s55, 1
        %s493 = smul.addr %s492, 4
        %s494 = scalar_lea.vmem [#allocation2], %s493
        %p495 = pneg %p68
        %p496 = pneg %p65
        %s497 = sand.u32 %s81, 1
        %s498 = scalar_lea.sflag [#allocation6], %s497
        %s499 = sand.u32 %s81, 1
        %s500 = scalar_lea.vmem [#allocation5], %s499
        %p501 = pneg %p94
        %p502 = pneg %p91
        %p503 = scmp.lt.s32.totalorder %s40, 1
        %s504 = scalar_select %p503, %s40, 1
        %s505 = smul.addr %s504, 4
        %s506 = smul.addr %s505, 4
        %s507 = scalar_lea.vmem %s2, %s506
        %p508 = pneg %p120
        %p509 = pneg %p117
        %p510 = scmp.lt.s32.totalorder %s40, 1
        %s511 = scalar_select %p510, %s40, 1
        %s512 = scalar_lea.vmem %s3, %s511
        %p513 = pneg %p146
        %p514 = pneg %p143
        %p515 = scmp.lt.s32.totalorder %s40, 1
        %s516 = scalar_select %p515, %s40, 1
        %s517 = smul.addr %s516, 4
        %s518 = smul.addr %s517, 4
        %s519 = scalar_lea.vmem %s4, %s518
        %p520 = pneg %p172
        %p521 = pneg %p169
        %p522 = scmp.lt.s32.totalorder %s40, 1
        %s523 = scalar_select %p522, %s40, 1
        %s524 = scalar_lea.vmem %s5, %s523
        %p525 = pneg %p198
        %p526 = pneg %p195
        %p527 = scmp.lt.s32.totalorder %s40, 1
        %s528 = scalar_select %p527, %s40, 1
        %s529 = smul.addr %s528, 4
        %s530 = smul.addr %s529, 4
        %s531 = scalar_lea.vmem %s6, %s530
        %p532 = pneg %p224
        %p533 = pneg %p221
        %p534 = scmp.lt.s32.totalorder %s40, 1
        %s535 = scalar_select %p534, %s40, 1
        %s536 = scalar_lea.vmem %s7, %s535
        %p537 = pneg %p250
        %p538 = pneg %p247
        %p539 = scmp.lt.s32.totalorder %s40, 1
        %s540 = scalar_select %p539, %s40, 1
        %s541 = smul.addr %s540, 8
        %s542 = smul.addr %s541, 4
        %s543 = scalar_lea.vmem %s8, %s542
        %p544 = pneg %p276
        %p545 = pneg %p273
        %p546 = scmp.lt.s32.totalorder %s40, 1
        %s547 = scalar_select %p546, %s40, 1
        %s548 = scalar_lea.vmem %s9, %s547
        %p549 = pneg %p302
        %p550 = pneg %p299
        %p551 = pneg %p328
        %p552 = pneg %p325
        %s553 = sand.u32 %s315, 1
        %s554 = scalar_lea.sflag [#allocation4], %s553
        %s555 = sand.u32 %s315, 1
        %s556 = smul.addr %s555, 4
        %s557 = scalar_lea.vmem [#allocation7], %s556
        %p558 = pneg %p356
        %p559 = pneg %p353
        %s560 = sand.u32 %s343, 1
        %s561 = scalar_lea.sflag [#allocation9], %s560
        %s562 = sand.u32 %s343, 1
        %s563 = smul.addr %s562, 4
        %s564 = scalar_lea.vmem [#allocation8], %s563
        %p565 = scmp.lt.s32.totalorder %s40, 1
        %s566 = scalar_select %p565, %s40, 1
        %s567 = smul.addr %s566, 4
        %s568 = smul.addr %s567, 4
        %s569 = scalar_lea.vmem %s2, %s568
        %p570 = scmp.lt.s32.totalorder %s40, 1
        %s571 = scalar_select %p570, %s40, 1
        %s572 = scalar_lea.vmem %s3, %s571
        %p573 = scmp.lt.s32.totalorder %s40, 1
        %s574 = scalar_select %p573, %s40, 1
        %s575 = smul.addr %s574, 4
        %s576 = smul.addr %s575, 4
        %s577 = scalar_lea.vmem %s4, %s576
        %p578 = scmp.lt.s32.totalorder %s40, 1
        %s579 = scalar_select %p578, %s40, 1
        %s580 = scalar_lea.vmem %s5, %s579
        %p581 = scmp.lt.s32.totalorder %s40, 1
        %s582 = scalar_select %p581, %s40, 1
        %s583 = smul.addr %s582, 4
        %s584 = smul.addr %s583, 4
        %s585 = scalar_lea.vmem %s6, %s584
        %p586 = scmp.lt.s32.totalorder %s40, 1
        %s587 = scalar_select %p586, %s40, 1
        %s588 = scalar_lea.vmem %s7, %s587
        %p589 = scmp.lt.s32.totalorder %s40, 1
        %s590 = scalar_select %p589, %s40, 1
        %s591 = smul.addr %s590, 8
        %s592 = smul.addr %s591, 4
        %s593 = scalar_lea.vmem %s8, %s592
        %p594 = scmp.lt.s32.totalorder %s40, 1
        %s595 = scalar_select %p594, %s40, 1
        %s596 = scalar_lea.vmem %s9, %s595
        %p598 = scmp.eq.s32.totalorder %s40, 0
        // Predicated region
        $region69: #{tpu_custom_call.1} parent=59 // pred_check
          %p599 = pneg %p598
        $region70: #{tpu_custom_call.1} parent=59 // pred_check_branch
          %601 = sbr.rel (%p599) target = $region72
        $region71: #{tpu_custom_call.1} parent=59 // pred_region
          %v602 = vld [vmem:[%s477] sm:$0xf]
          %vm603 = vcmask 257024
          %604 = vst.msk [vmem:[%s557] sm:$0xf] %vm603, %v602
        $region72: #{tpu_custom_call.1} parent=59 // pred_fallthru
          _
        %v605 = vld [vmem:[%s557] sm:$0xf]
        %v606 = vld [vmem:[%s569] sm:$0xf]
        %v607 = vld [vmem:[%s569 + $0x4] sm:$0xf]
        %v608 = vld [vmem:[%s569 + $0x8] sm:$0xf]
        %v609 = vld [vmem:[%s569 + $0xc] sm:$0xf]
        %v610 = vld [vmem:[%s572] sm:$0x1]
        %v612 = vlaneseq
        %v613 = vshrl.u32 %v612, 7
        %v614 = vsub.s32 0, %v613
        %v615 = vrot.slane %v610, %v614
        %v621 = vunpack.c.l.b16 %v606
        %v622 = vunpack.c.l.b16 %v607
        %v623 = vunpack.c.l.b16 %v608
        %v624 = vunpack.c.l.b16 %v609
        %v625 = vpack.c.b16 %v622, %v621
        %v626 = vpack.c.b16 %v624, %v623
        %vm629 = vcmask 261120
        %v631 = vsel %vm629, %v605, 0
        %633 = vmatprep.subr.bf16.mxu0 0
        %634 = vmatpush1.bf16.msra.mxu0 0
        %635 = vmatprep.subr.bf16.mxu0 0
        %636 = vmatpush1.bf16.msra.mxu0 0
        %637 = vmatprep.subr.bf16.mxu0 0
        %638 = vmatpush1.bf16.msra.mxu0 0
        %639 = vmatprep.subr.bf16.mxu0 0
        %640 = vmatpush1.bf16.msra.mxu0 0
        %641 = vmatprep.subr.bf16.mxu0 0
        %642 = vmatpush1.bf16.msra.mxu0 0
        %643 = vmatprep.subr.bf16.mxu0 0
        %644 = vmatpush1.bf16.msra.mxu0 0
        %645 = vmatprep.subr.bf16.mxu0 0
        %646 = vmatpush1.bf16.msra.mxu0 %v626
        %647 = vmatprep.subr.bf16.mxu0 0
        %648 = vmatpush1.bf16.msra.mxu0 %v625
        %649 = vmatprep.subr.bf16.mxu0 0
        %650 = vmatpush2.bf16.msra.mxu0 0
        %651 = vmatprep.subr.bf16.mxu0 0
        %652 = vmatpush2.bf16.msra.mxu0 0
        %653 = vmatprep.subr.bf16.mxu0 0
        %654 = vmatpush2.bf16.msra.mxu0 0
        %655 = vmatprep.subr.bf16.mxu0 0
        %656 = vmatpush2.bf16.msra.mxu0 0
        %657 = vmatprep.subr.bf16.mxu0 0
        %658 = vmatpush2.bf16.msra.mxu0 0
        %659 = vmatprep.subr.bf16.mxu0 0
        %660 = vmatpush2.bf16.msra.mxu0 0
        %661 = vmatprep.subr.bf16.mxu0 0
        %662 = vmatpush2.bf16.msra.mxu0 0
        %663 = vmatprep.subr.bf16.mxu0 0
        %664 = vmatpush2.bf16.msra.mxu0 0
        %665 = vmatprep.mubr.bf16.mxu0 0
        %666 = vmatmul.mubr.bf16.gmra.mxu0 %v631
        %v667 = vpop.f32.mrf.mxu0
        %v668 = vadd.f32 %v615, %v667
        %v669 = vpop.f32.mrf.mxu0
        %v670 = vpop.f32.mrf.mxu0
        %v671 = vpop.f32.mrf.mxu0
        %672 = vdwg.mxu0
        %v673 = vpack.c.bf16 %v668, %v668
        %v674 = vld [vmem:[%s485] sm:$0x1]
        %676 = vrot.lane.b32.xlu0 %v673, 96
        %v677 = vpop.permute.xlu0 %676
        %vm678 = vcmask 64512
        %v680 = vsel %vm678, %v673, 0
        %v683 = vsel %vm678, %v677, 0
        %685 = vmatprep.subr.bf16.mxu0 0
        %686 = vmatpush1.bf16.xpose.msra.mxu0 0
        %687 = vmatprep.subr.bf16.mxu0 0
        %688 = vmatpush1.bf16.xpose.msra.mxu0 0
        %689 = vmatprep.subr.bf16.mxu0 0
        %690 = vmatpush1.bf16.xpose.msra.mxu0 0
        %691 = vmatprep.subr.bf16.mxu0 0
        %692 = vmatpush1.bf16.xpose.msra.mxu0 0
        %693 = vmatprep.subr.bf16.mxu0 0
        %694 = vmatpush1.bf16.xpose.msra.mxu0 0
        %695 = vmatprep.subr.bf16.mxu0 0
        %696 = vmatpush1.bf16.xpose.msra.mxu0 0
        %697 = vmatprep.subr.bf16.mxu0 0
        %698 = vmatpush1.bf16.xpose.msra.mxu0 0
        %699 = vmatprep.subr.bf16.mxu0 0
        %700 = vmatpush1.bf16.xpose.msra.mxu0 %v683
        %701 = vmatprep.subr.bf16.mxu0 0
        %702 = vmatpush2.bf16.xpose.msra.mxu0 0
        %703 = vmatprep.subr.bf16.mxu0 0
        %704 = vmatpush2.bf16.xpose.msra.mxu0 0
        %705 = vmatprep.subr.bf16.mxu0 0
        %706 = vmatpush2.bf16.xpose.msra.mxu0 0
        %707 = vmatprep.subr.bf16.mxu0 0
        %708 = vmatpush2.bf16.xpose.msra.mxu0 0
        %709 = vmatprep.subr.bf16.mxu0 0
        %710 = vmatpush2.bf16.xpose.msra.mxu0 0
        %711 = vmatprep.subr.bf16.mxu0 0
        %712 = vmatpush2.bf16.xpose.msra.mxu0 0
        %713 = vmatprep.subr.bf16.mxu0 0
        %714 = vmatpush2.bf16.xpose.msra.mxu0 0
        %715 = vmatprep.subr.bf16.mxu0 0
        %716 = vmatpush2.bf16.xpose.msra.mxu0 0
        %717 = vmatprep.mubr.bf16.mxu0 0
        %718 = vmatmul.mubr.bf16.gmra.mxu0 %v680
        %v719 = vpop.f32.mrf.mxu0
        %v720 = vadd.f32 0.0, %v719
        %v721 = vpop.f32.mrf.mxu0
        %v722 = vpop.f32.mrf.mxu0
        %v723 = vpop.f32.mrf.mxu0
        %724 = vdwg.mxu0
        %v725 = vmul.f32 %v720, 0.35355338
        %v727 = vlaneseq
        %v728 = vshrl.u32 %v727, 7
        %v729 = vsub.s32 0, %v728
        %v730 = vrot.slane %v674, %v729
        %v732 = vadd.f32 %v725, %v730
        %v733 = vsel %vm678, %v732, -inf
        %734 = vmax.xlane.f32.xlu0 %v733
        %v735 = vpop.xlane.xlu0 %734
        %v736 = vsub.f32 %v732, %v735
        %v737 = vmul.f32 %v736, 1.442695
        %v738 = vpow.pop %v737
        %v739 = vsel %vm678, %v738, 0.0
        %740 = vadd.xlane.f32.xlu0 %v739
        %v741 = vpop.xlane.xlu0 %740
        %v742 = vrcp.pop %v741
        %v743 = vmul.f32 %v738, %v742
        %v744 = vpack.c.bf16 %v743, %v743
        %vm745 = vcmask 60416
        %746 = vst.msk [vmem:[%s564] sm:$0xf] %vm745, %v744
        %747 = vrot.lane.b32.xlu0 %v673, 64
        %v748 = vpop.permute.xlu0 %747
        %v750 = vsel %vm678, %v744, 0
        %vm752 = vcmask 1043456
        %v754 = vsel %vm752, %v748, 0
        %756 = vmatprep.subr.bf16.mxu0 0
        %757 = vmatpush1.bf16.msra.mxu0 0
        %758 = vmatprep.subr.bf16.mxu0 0
        %759 = vmatpush1.bf16.msra.mxu0 0
        %760 = vmatprep.subr.bf16.mxu0 0
        %761 = vmatpush1.bf16.msra.mxu0 0
        %762 = vmatprep.subr.bf16.mxu0 0
        %763 = vmatpush1.bf16.msra.mxu0 0
        %764 = vmatprep.subr.bf16.mxu0 0
        %765 = vmatpush1.bf16.msra.mxu0 0
        %766 = vmatprep.subr.bf16.mxu0 0
        %767 = vmatpush1.bf16.msra.mxu0 0
        %768 = vmatprep.subr.bf16.mxu0 0
        %769 = vmatpush1.bf16.msra.mxu0 0
        %770 = vmatprep.subr.bf16.mxu0 0
        %771 = vmatpush1.bf16.msra.mxu0 %v754
        %772 = vmatprep.subr.bf16.mxu0 0
        %773 = vmatpush2.bf16.msra.mxu0 0
        %774 = vmatprep.subr.bf16.mxu0 0
        %775 = vmatpush2.bf16.msra.mxu0 0
        %776 = vmatprep.subr.bf16.mxu0 0
        %777 = vmatpush2.bf16.msra.mxu0 0
        %778 = vmatprep.subr.bf16.mxu0 0
        %779 = vmatpush2.bf16.msra.mxu0 0
        %780 = vmatprep.subr.bf16.mxu0 0
        %781 = vmatpush2.bf16.msra.mxu0 0
        %782 = vmatprep.subr.bf16.mxu0 0
        %783 = vmatpush2.bf16.msra.mxu0 0
        %784 = vmatprep.subr.bf16.mxu0 0
        %785 = vmatpush2.bf16.msra.mxu0 0
        %786 = vmatprep.subr.bf16.mxu0 0
        %787 = vmatpush2.bf16.msra.mxu0 0
        %788 = vmatprep.mubr.bf16.mxu0 0
        %789 = vmatmul.mubr.bf16.gmra.mxu0 %v750
        %v790 = vpop.f32.mrf.mxu0
        %v791 = vadd.f32 0.0, %v790
        %v792 = vpop.f32.mrf.mxu0
        %v793 = vpop.f32.mrf.mxu0
        %v794 = vpop.f32.mrf.mxu0
        %795 = vdwg.mxu0
        %v796 = vpack.c.bf16 %v791, %v791
        %v797 = vld [vmem:[%s577] sm:$0xf]
        %798 = vrot.lane.b32.xlu0 %v673, 120
        %v799 = vpop.permute.xlu0 %798
        %800 = vrot.lane.b32.xlu0 %v673, 88
        %v801 = vpop.permute.xlu0 %800
        %v803 = vsel %vm678, %v799, 0
        %v806 = vsel %vm678, %v801, 0
        %808 = vmatprep.subr.bf16.mxu0 0
        %809 = vmatpush1.bf16.xpose.msra.mxu0 0
        %810 = vmatprep.subr.bf16.mxu0 0
        %811 = vmatpush1.bf16.xpose.msra.mxu0 0
        %812 = vmatprep.subr.bf16.mxu0 0
        %813 = vmatpush1.bf16.xpose.msra.mxu0 0
        %814 = vmatprep.subr.bf16.mxu0 0
        %815 = vmatpush1.bf16.xpose.msra.mxu0 0
        %816 = vmatprep.subr.bf16.mxu0 0
        %817 = vmatpush1.bf16.xpose.msra.mxu0 0
        %818 = vmatprep.subr.bf16.mxu0 0
        %819 = vmatpush1.bf16.xpose.msra.mxu0 0
        %820 = vmatprep.subr.bf16.mxu0 0
        %821 = vmatpush1.bf16.xpose.msra.mxu0 0
        %822 = vmatprep.subr.bf16.mxu0 0
        %823 = vmatpush1.bf16.xpose.msra.mxu0 %v806
        %824 = vmatprep.subr.bf16.mxu0 0
        %825 = vmatpush2.bf16.xpose.msra.mxu0 0
        %826 = vmatprep.subr.bf16.mxu0 0
        %827 = vmatpush2.bf16.xpose.msra.mxu0 0
        %828 = vmatprep.subr.bf16.mxu0 0
        %829 = vmatpush2.bf16.xpose.msra.mxu0 0
        %830 = vmatprep.subr.bf16.mxu0 0
        %831 = vmatpush2.bf16.xpose.msra.mxu0 0
        %832 = vmatprep.subr.bf16.mxu0 0
        %833 = vmatpush2.bf16.xpose.msra.mxu0 0
        %834 = vmatprep.subr.bf16.mxu0 0
        %835 = vmatpush2.bf16.xpose.msra.mxu0 0
        %836 = vmatprep.subr.bf16.mxu0 0
        %837 = vmatpush2.bf16.xpose.msra.mxu0 0
        %838 = vmatprep.subr.bf16.mxu0 0
        %839 = vmatpush2.bf16.xpose.msra.mxu0 0
        %840 = vmatprep.mubr.bf16.mxu0 0
        %841 = vmatmul.mubr.bf16.gmra.mxu0 %v803
        %v842 = vpop.f32.mrf.mxu0
        %v843 = vadd.f32 0.0, %v842
        %v844 = vpop.f32.mrf.mxu0
        %v845 = vpop.f32.mrf.mxu0
        %v846 = vpop.f32.mrf.mxu0
        %847 = vdwg.mxu0
        %v848 = vmul.f32 %v843, 0.35355338
        %v849 = vadd.f32 %v848, %v730
        %v850 = vsel %vm678, %v849, -inf
        %851 = vmax.xlane.f32.xlu0 %v850
        %v852 = vpop.xlane.xlu0 %851
        %v853 = vsub.f32 %v849, %v852
        %v854 = vmul.f32 %v853, 1.442695
        %v855 = vpow.pop %v854
        %v856 = vsel %vm678, %v855, 0.0
        %857 = vadd.xlane.f32.xlu0 %v856
        %v858 = vpop.xlane.xlu0 %857
        %v859 = vrcp.pop %v858
        %v860 = vmul.f32 %v855, %v859
        %v861 = vpack.c.bf16 %v860, %v860
        %v863 = vunpack.c.l.b16 %v861
        %v864 = vpack.c.b16 %v863, %v863
        %865 = vrot.lane.b32.xlu0 %v864, 8
        %v866 = vpop.permute.xlu0 %865
        %vm868 = vcmask 126016
        %869 = vst.msk [vmem:[%s564] sm:$0xf] %vm868, %v866
        %870 = vrot.lane.b32.xlu0 %v673, 56
        %v871 = vpop.permute.xlu0 %870
        %v873 = vsel %vm678, %v861, 0
        %v876 = vsel %vm752, %v871, 0
        %878 = vmatprep.subr.bf16.mxu0 0
        %879 = vmatpush1.bf16.msra.mxu0 0
        %880 = vmatprep.subr.bf16.mxu0 0
        %881 = vmatpush1.bf16.msra.mxu0 0
        %882 = vmatprep.subr.bf16.mxu0 0
        %883 = vmatpush1.bf16.msra.mxu0 0
        %884 = vmatprep.subr.bf16.mxu0 0
        %885 = vmatpush1.bf16.msra.mxu0 0
        %886 = vmatprep.subr.bf16.mxu0 0
        %887 = vmatpush1.bf16.msra.mxu0 0
        %888 = vmatprep.subr.bf16.mxu0 0
        %889 = vmatpush1.bf16.msra.mxu0 0
        %890 = vmatprep.subr.bf16.mxu0 0
        %891 = vmatpush1.bf16.msra.mxu0 0
        %892 = vmatprep.subr.bf16.mxu0 0
        %893 = vmatpush1.bf16.msra.mxu0 %v876
        %894 = vmatprep.subr.bf16.mxu0 0
        %895 = vmatpush2.bf16.msra.mxu0 0
        %896 = vmatprep.subr.bf16.mxu0 0
        %897 = vmatpush2.bf16.msra.mxu0 0
        %898 = vmatprep.subr.bf16.mxu0 0
        %899 = vmatpush2.bf16.msra.mxu0 0
        %900 = vmatprep.subr.bf16.mxu0 0
        %901 = vmatpush2.bf16.msra.mxu0 0
        %902 = vmatprep.subr.bf16.mxu0 0
        %903 = vmatpush2.bf16.msra.mxu0 0
        %904 = vmatprep.subr.bf16.mxu0 0
        %905 = vmatpush2.bf16.msra.mxu0 0
        %906 = vmatprep.subr.bf16.mxu0 0
        %907 = vmatpush2.bf16.msra.mxu0 0
        %908 = vmatprep.subr.bf16.mxu0 0
        %909 = vmatpush2.bf16.msra.mxu0 0
        %910 = vmatprep.mubr.bf16.mxu0 0
        %911 = vmatmul.mubr.bf16.gmra.mxu0 %v873
        %v912 = vpop.f32.mrf.mxu0
        %v913 = vadd.f32 0.0, %v912
        %v914 = vpop.f32.mrf.mxu0
        %v915 = vpop.f32.mrf.mxu0
        %v916 = vpop.f32.mrf.mxu0
        %917 = vdwg.mxu0
        %v918 = vpack.c.bf16 %v913, %v913
        %v919 = vld [vmem:[%s577 + $0x4] sm:$0xf]
        %v921 = vsel %vm678, %v918, 0
        %v924 = vsel %vm752, %v919, 0
        %926 = vmatprep.subr.bf16.mxu0 0
        %927 = vmatpush1.bf16.msra.mxu0 0
        %928 = vmatprep.subr.bf16.mxu0 0
        %929 = vmatpush1.bf16.msra.mxu0 0
        %930 = vmatprep.subr.bf16.mxu0 0
        %931 = vmatpush1.bf16.msra.mxu0 0
        %932 = vmatprep.subr.bf16.mxu0 0
        %933 = vmatpush1.bf16.msra.mxu0 0
        %934 = vmatprep.subr.bf16.mxu0 0
        %935 = vmatpush1.bf16.msra.mxu0 0
        %936 = vmatprep.subr.bf16.mxu0 0
        %937 = vmatpush1.bf16.msra.mxu0 0
        %938 = vmatprep.subr.bf16.mxu0 0
        %939 = vmatpush1.bf16.msra.mxu0 0
        %940 = vmatprep.subr.bf16.mxu0 0
        %941 = vmatpush1.bf16.msra.mxu0 %v924
        %942 = vmatprep.subr.bf16.mxu0 0
        %943 = vmatpush2.bf16.msra.mxu0 0
        %944 = vmatprep.subr.bf16.mxu0 0
        %945 = vmatpush2.bf16.msra.mxu0 0
        %946 = vmatprep.subr.bf16.mxu0 0
        %947 = vmatpush2.bf16.msra.mxu0 0
        %948 = vmatprep.subr.bf16.mxu0 0
        %949 = vmatpush2.bf16.msra.mxu0 0
        %950 = vmatprep.subr.bf16.mxu0 0
        %951 = vmatpush2.bf16.msra.mxu0 0
        %952 = vmatprep.subr.bf16.mxu0 0
        %953 = vmatpush2.bf16.msra.mxu0 0
        %954 = vmatprep.subr.bf16.mxu0 0
        %955 = vmatpush2.bf16.msra.mxu0 0
        %956 = vmatprep.subr.bf16.mxu0 0
        %957 = vmatpush2.bf16.msra.mxu0 0
        %958 = vmatprep.mubr.bf16.mxu0 0
        %959 = vmatmul.mubr.bf16.gmra.mxu0 %v921
        %v960 = vpop.f32.mrf.mxu0
        %v961 = vadd.f32 0.0, %v960
        %v962 = vpop.f32.mrf.mxu0
        %v963 = vpop.f32.mrf.mxu0
        %v964 = vpop.f32.mrf.mxu0
        %965 = vdwg.mxu0
        %v967 = vsel %vm678, %v796, 0
        %v970 = vsel %vm752, %v797, 0
        %972 = vmatprep.subr.bf16.mxu0 0
        %973 = vmatpush1.bf16.msra.mxu0 0
        %974 = vmatprep.subr.bf16.mxu0 0
        %975 = vmatpush1.bf16.msra.mxu0 0
        %976 = vmatprep.subr.bf16.mxu0 0
        %977 = vmatpush1.bf16.msra.mxu0 0
        %978 = vmatprep.subr.bf16.mxu0 0
        %979 = vmatpush1.bf16.msra.mxu0 0
        %980 = vmatprep.subr.bf16.mxu0 0
        %981 = vmatpush1.bf16.msra.mxu0 0
        %982 = vmatprep.subr.bf16.mxu0 0
        %983 = vmatpush1.bf16.msra.mxu0 0
        %984 = vmatprep.subr.bf16.mxu0 0
        %985 = vmatpush1.bf16.msra.mxu0 0
        %986 = vmatprep.subr.bf16.mxu0 0
        %987 = vmatpush1.bf16.msra.mxu0 %v970
        %988 = vmatprep.subr.bf16.mxu0 0
        %989 = vmatpush2.bf16.msra.mxu0 0
        %990 = vmatprep.subr.bf16.mxu0 0
        %991 = vmatpush2.bf16.msra.mxu0 0
        %992 = vmatprep.subr.bf16.mxu0 0
        %993 = vmatpush2.bf16.msra.mxu0 0
        %994 = vmatprep.subr.bf16.mxu0 0
        %995 = vmatpush2.bf16.msra.mxu0 0
        %996 = vmatprep.subr.bf16.mxu0 0
        %997 = vmatpush2.bf16.msra.mxu0 0
        %998 = vmatprep.subr.bf16.mxu0 0
        %999 = vmatpush2.bf16.msra.mxu0 0
        %1000 = vmatprep.subr.bf16.mxu0 0
        %1001 = vmatpush2.bf16.msra.mxu0 0
        %1002 = vmatprep.subr.bf16.mxu0 0
        %1003 = vmatpush2.bf16.msra.mxu0 0
        %1004 = vmatprep.mubr.bf16.mxu0 0
        %1005 = vmatmul.mubr.bf16.gmra.mxu0 %v967
        %v1006 = vpop.f32.mrf.mxu0
        %v1007 = vadd.f32 %v961, %v1006
        %v1008 = vpop.f32.mrf.mxu0
        %v1009 = vpop.f32.mrf.mxu0
        %v1010 = vpop.f32.mrf.mxu0
        %1011 = vdwg.mxu0
        %1012 = vrot.lane.b32.xlu0 %v673, 112
        %v1013 = vpop.permute.xlu0 %1012
        %1014 = vrot.lane.b32.xlu0 %v673, 80
        %v1015 = vpop.permute.xlu0 %1014
        %v1017 = vsel %vm678, %v1013, 0
        %v1020 = vsel %vm678, %v1015, 0
        %1022 = vmatprep.subr.bf16.mxu0 0
        %1023 = vmatpush1.bf16.xpose.msra.mxu0 0
        %1024 = vmatprep.subr.bf16.mxu0 0
        %1025 = vmatpush1.bf16.xpose.msra.mxu0 0
        %1026 = vmatprep.subr.bf16.mxu0 0
        %1027 = vmatpush1.bf16.xpose.msra.mxu0 0
        %1028 = vmatprep.subr.bf16.mxu0 0
        %1029 = vmatpush1.bf16.xpose.msra.mxu0 0
        %1030 = vmatprep.subr.bf16.mxu0 0
        %1031 = vmatpush1.bf16.xpose.msra.mxu0 0
        %1032 = vmatprep.subr.bf16.mxu0 0
        %1033 = vmatpush1.bf16.xpose.msra.mxu0 0
        %1034 = vmatprep.subr.bf16.mxu0 0
        %1035 = vmatpush1.bf16.xpose.msra.mxu0 0
        %1036 = vmatprep.subr.bf16.mxu0 0
        %1037 = vmatpush1.bf16.xpose.msra.mxu0 %v1020
        %1038 = vmatprep.subr.bf16.mxu0 0
        %1039 = vmatpush2.bf16.xpose.msra.mxu0 0
        %1040 = vmatprep.subr.bf16.mxu0 0
        %1041 = vmatpush2.bf16.xpose.msra.mxu0 0
        %1042 = vmatprep.subr.bf16.mxu0 0
        %1043 = vmatpush2.bf16.xpose.msra.mxu0 0
        %1044 = vmatprep.subr.bf16.mxu0 0
        %1045 = vmatpush2.bf16.xpose.msra.mxu0 0
        %1046 = vmatprep.subr.bf16.mxu0 0
        %1047 = vmatpush2.bf16.xpose.msra.mxu0 0
        %1048 = vmatprep.subr.bf16.mxu0 0
        %1049 = vmatpush2.bf16.xpose.msra.mxu0 0
        %1050 = vmatprep.subr.bf16.mxu0 0
        %1051 = vmatpush2.bf16.xpose.msra.mxu0 0
        %1052 = vmatprep.subr.bf16.mxu0 0
        %1053 = vmatpush2.bf16.xpose.msra.mxu0 0
        %1054 = vmatprep.mubr.bf16.mxu0 0
        %1055 = vmatmul.mubr.bf16.gmra.mxu0 %v1017
        %v1056 = vpop.f32.mrf.mxu0
        %v1057 = vadd.f32 0.0, %v1056
        %v1058 = vpop.f32.mrf.mxu0
        %v1059 = vpop.f32.mrf.mxu0
        %v1060 = vpop.f32.mrf.mxu0
        %1061 = vdwg.mxu0
        %v1062 = vmul.f32 %v1057, 0.35355338
        %v1063 = vadd.f32 %v1062, %v730
        %v1064 = vsel %vm678, %v1063, -inf
        %1065 = vmax.xlane.f32.xlu0 %v1064
        %v1066 = vpop.xlane.xlu0 %1065
        %v1067 = vsub.f32 %v1063, %v1066
        %v1068 = vmul.f32 %v1067, 1.442695
        %v1069 = vpow.pop %v1068
        %v1070 = vsel %vm678, %v1069, 0.0
        %1071 = vadd.xlane.f32.xlu0 %v1070
        %v1072 = vpop.xlane.xlu0 %1071
        %v1073 = vrcp.pop %v1072
        %v1074 = vmul.f32 %v1069, %v1073
        %v1075 = vpack.c.bf16 %v1074, %v1074
        %v1077 = vunpack.c.l.b16 %v1075
        %v1078 = vpack.c.b16 %v1077, %v1077
        %1079 = vrot.lane.b32.xlu0 %v1078, 16
        %v1080 = vpop.permute.xlu0 %1079
        %vm1082 = vcmask 191616
        %1083 = vst.msk [vmem:[%s564] sm:$0xf] %vm1082, %v1080
        %1084 = vrot.lane.b32.xlu0 %v673, 48
        %v1085 = vpop.permute.xlu0 %1084
        %v1087 = vsel %vm678, %v1075, 0
        %v1090 = vsel %vm752, %v1085, 0
        %1092 = vmatprep.subr.bf16.mxu0 0
        %1093 = vmatpush1.bf16.msra.mxu0 0
        %1094 = vmatprep.subr.bf16.mxu0 0
        %1095 = vmatpush1.bf16.msra.mxu0 0
        %1096 = vmatprep.subr.bf16.mxu0 0
        %1097 = vmatpush1.bf16.msra.mxu0 0
        %1098 = vmatprep.subr.bf16.mxu0 0
        %1099 = vmatpush1.bf16.msra.mxu0 0
        %1100 = vmatprep.subr.bf16.mxu0 0
        %1101 = vmatpush1.bf16.msra.mxu0 0
        %1102 = vmatprep.subr.bf16.mxu0 0
        %1103 = vmatpush1.bf16.msra.mxu0 0
        %1104 = vmatprep.subr.bf16.mxu0 0
        %1105 = vmatpush1.bf16.msra.mxu0 0
        %1106 = vmatprep.subr.bf16.mxu0 0
        %1107 = vmatpush1.bf16.msra.mxu0 %v1090
        %1108 = vmatprep.subr.bf16.mxu0 0
        %1109 = vmatpush2.bf16.msra.mxu0 0
        %1110 = vmatprep.subr.bf16.mxu0 0
        %1111 = vmatpush2.bf16.msra.mxu0 0
        %1112 = vmatprep.subr.bf16.mxu0 0
        %1113 = vmatpush2.bf16.msra.mxu0 0
        %1114 = vmatprep.subr.bf16.mxu0 0
        %1115 = vmatpush2.bf16.msra.mxu0 0
        %1116 = vmatprep.subr.bf16.mxu0 0
        %1117 = vmatpush2.bf16.msra.mxu0 0
        %1118 = vmatprep.subr.bf16.mxu0 0
        %1119 = vmatpush2.bf16.msra.mxu0 0
        %1120 = vmatprep.subr.bf16.mxu0 0
        %1121 = vmatpush2.bf16.msra.mxu0 0
        %1122 = vmatprep.subr.bf16.mxu0 0
        %1123 = vmatpush2.bf16.msra.mxu0 0
        %1124 = vmatprep.mubr.bf16.mxu0 0
        %1125 = vmatmul.mubr.bf16.gmra.mxu0 %v1087
        %v1126 = vpop.f32.mrf.mxu0
        %v1127 = vadd.f32 0.0, %v1126
        %v1128 = vpop.f32.mrf.mxu0
        %v1129 = vpop.f32.mrf.mxu0
        %v1130 = vpop.f32.mrf.mxu0
        %1131 = vdwg.mxu0
        %v1132 = vpack.c.bf16 %v1127, %v1127
        %v1133 = vld [vmem:[%s577 + $0x8] sm:$0xf]
        %v1135 = vsel %vm678, %v1132, 0
        %v1138 = vsel %vm752, %v1133, 0
        %1140 = vmatprep.subr.bf16.mxu0 0
        %1141 = vmatpush1.bf16.msra.mxu0 0
        %1142 = vmatprep.subr.bf16.mxu0 0
        %1143 = vmatpush1.bf16.msra.mxu0 0
        %1144 = vmatprep.subr.bf16.mxu0 0
        %1145 = vmatpush1.bf16.msra.mxu0 0
        %1146 = vmatprep.subr.bf16.mxu0 0
        %1147 = vmatpush1.bf16.msra.mxu0 0
        %1148 = vmatprep.subr.bf16.mxu0 0
        %1149 = vmatpush1.bf16.msra.mxu0 0
        %1150 = vmatprep.subr.bf16.mxu0 0
        %1151 = vmatpush1.bf16.msra.mxu0 0
        %1152 = vmatprep.subr.bf16.mxu0 0
        %1153 = vmatpush1.bf16.msra.mxu0 0
        %1154 = vmatprep.subr.bf16.mxu0 0
        %1155 = vmatpush1.bf16.msra.mxu0 %v1138
        %1156 = vmatprep.subr.bf16.mxu0 0
        %1157 = vmatpush2.bf16.msra.mxu0 0
        %1158 = vmatprep.subr.bf16.mxu0 0
        %1159 = vmatpush2.bf16.msra.mxu0 0
        %1160 = vmatprep.subr.bf16.mxu0 0
        %1161 = vmatpush2.bf16.msra.mxu0 0
        %1162 = vmatprep.subr.bf16.mxu0 0
        %1163 = vmatpush2.bf16.msra.mxu0 0
        %1164 = vmatprep.subr.bf16.mxu0 0
        %1165 = vmatpush2.bf16.msra.mxu0 0
        %1166 = vmatprep.subr.bf16.mxu0 0
        %1167 = vmatpush2.bf16.msra.mxu0 0
        %1168 = vmatprep.subr.bf16.mxu0 0
        %1169 = vmatpush2.bf16.msra.mxu0 0
        %1170 = vmatprep.subr.bf16.mxu0 0
        %1171 = vmatpush2.bf16.msra.mxu0 0
        %1172 = vmatprep.mubr.bf16.mxu0 0
        %1173 = vmatmul.mubr.bf16.gmra.mxu0 %v1135
        %v1174 = vpop.f32.mrf.mxu0
        %v1175 = vadd.f32 0.0, %v1174
        %v1176 = vpop.f32.mrf.mxu0
        %v1177 = vpop.f32.mrf.mxu0
        %v1178 = vpop.f32.mrf.mxu0
        %1179 = vdwg.mxu0
        %v1180 = vadd.f32 %v1007, %v1175
        %1181 = vrot.lane.b32.xlu0 %v673, 104
        %v1182 = vpop.permute.xlu0 %1181
        %1183 = vrot.lane.b32.xlu0 %v673, 72
        %v1184 = vpop.permute.xlu0 %1183
        %v1186 = vsel %vm678, %v1182, 0
        %v1189 = vsel %vm678, %v1184, 0
        %1191 = vmatprep.subr.bf16.mxu0 0
        %1192 = vmatpush1.bf16.xpose.msra.mxu0 0
        %1193 = vmatprep.subr.bf16.mxu0 0
        %1194 = vmatpush1.bf16.xpose.msra.mxu0 0
        %1195 = vmatprep.subr.bf16.mxu0 0
        %1196 = vmatpush1.bf16.xpose.msra.mxu0 0
        %1197 = vmatprep.subr.bf16.mxu0 0
        %1198 = vmatpush1.bf16.xpose.msra.mxu0 0
        %1199 = vmatprep.subr.bf16.mxu0 0
        %1200 = vmatpush1.bf16.xpose.msra.mxu0 0
        %1201 = vmatprep.subr.bf16.mxu0 0
        %1202 = vmatpush1.bf16.xpose.msra.mxu0 0
        %1203 = vmatprep.subr.bf16.mxu0 0
        %1204 = vmatpush1.bf16.xpose.msra.mxu0 0
        %1205 = vmatprep.subr.bf16.mxu0 0
        %1206 = vmatpush1.bf16.xpose.msra.mxu0 %v1189
        %1207 = vmatprep.subr.bf16.mxu0 0
        %1208 = vmatpush2.bf16.xpose.msra.mxu0 0
        %1209 = vmatprep.subr.bf16.mxu0 0
        %1210 = vmatpush2.bf16.xpose.msra.mxu0 0
        %1211 = vmatprep.subr.bf16.mxu0 0
        %1212 = vmatpush2.bf16.xpose.msra.mxu0 0
        %1213 = vmatprep.subr.bf16.mxu0 0
        %1214 = vmatpush2.bf16.xpose.msra.mxu0 0
        %1215 = vmatprep.subr.bf16.mxu0 0
        %1216 = vmatpush2.bf16.xpose.msra.mxu0 0
        %1217 = vmatprep.subr.bf16.mxu0 0
        %1218 = vmatpush2.bf16.xpose.msra.mxu0 0
        %1219 = vmatprep.subr.bf16.mxu0 0
        %1220 = vmatpush2.bf16.xpose.msra.mxu0 0
        %1221 = vmatprep.subr.bf16.mxu0 0
        %1222 = vmatpush2.bf16.xpose.msra.mxu0 0
        %1223 = vmatprep.mubr.bf16.mxu0 0
        %1224 = vmatmul.mubr.bf16.gmra.mxu0 %v1186
        %v1225 = vpop.f32.mrf.mxu0
        %v1226 = vadd.f32 0.0, %v1225
        %v1227 = vpop.f32.mrf.mxu0
        %v1228 = vpop.f32.mrf.mxu0
        %v1229 = vpop.f32.mrf.mxu0
        %1230 = vdwg.mxu0
        %v1231 = vmul.f32 %v1226, 0.35355338
        %v1232 = vadd.f32 %v1231, %v730
        %v1233 = vsel %vm678, %v1232, -inf
        %1234 = vmax.xlane.f32.xlu0 %v1233
        %v1235 = vpop.xlane.xlu0 %1234
        %v1236 = vsub.f32 %v1232, %v1235
        %v1237 = vmul.f32 %v1236, 1.442695
        %v1238 = vpow.pop %v1237
        %v1239 = vsel %vm678, %v1238, 0.0
        %1240 = vadd.xlane.f32.xlu0 %v1239
        %v1241 = vpop.xlane.xlu0 %1240
        %v1242 = vrcp.pop %v1241
        %v1243 = vmul.f32 %v1238, %v1242
        %v1244 = vpack.c.bf16 %v1243, %v1243
        %v1246 = vunpack.c.l.b16 %v1244
        %v1247 = vpack.c.b16 %v1246, %v1246
        %1248 = vrot.lane.b32.xlu0 %v1247, 24
        %v1249 = vpop.permute.xlu0 %1248
        %vm1251 = vcmask 257216
        %1252 = vst.msk [vmem:[%s564] sm:$0xf] %vm1251, %v1249
        %1253 = vrot.lane.b32.xlu0 %v673, 40
        %v1254 = vpop.permute.xlu0 %1253
        %v1256 = vsel %vm678, %v1244, 0
        %v1259 = vsel %vm752, %v1254, 0
        %1261 = vmatprep.subr.bf16.mxu0 0
        %1262 = vmatpush1.bf16.msra.mxu0 0
        %1263 = vmatprep.subr.bf16.mxu0 0
        %1264 = vmatpush1.bf16.msra.mxu0 0
        %1265 = vmatprep.subr.bf16.mxu0 0
        %1266 = vmatpush1.bf16.msra.mxu0 0
        %1267 = vmatprep.subr.bf16.mxu0 0
        %1268 = vmatpush1.bf16.msra.mxu0 0
        %1269 = vmatprep.subr.bf16.mxu0 0
        %1270 = vmatpush1.bf16.msra.mxu0 0
        %1271 = vmatprep.subr.bf16.mxu0 0
        %1272 = vmatpush1.bf16.msra.mxu0 0
        %1273 = vmatprep.subr.bf16.mxu0 0
        %1274 = vmatpush1.bf16.msra.mxu0 0
        %1275 = vmatprep.subr.bf16.mxu0 0
        %1276 = vmatpush1.bf16.msra.mxu0 %v1259
        %1277 = vmatprep.subr.bf16.mxu0 0
        %1278 = vmatpush2.bf16.msra.mxu0 0
        %1279 = vmatprep.subr.bf16.mxu0 0
        %1280 = vmatpush2.bf16.msra.mxu0 0
        %1281 = vmatprep.subr.bf16.mxu0 0
        %1282 = vmatpush2.bf16.msra.mxu0 0
        %1283 = vmatprep.subr.bf16.mxu0 0
        %1284 = vmatpush2.bf16.msra.mxu0 0
        %1285 = vmatprep.subr.bf16.mxu0 0
        %1286 = vmatpush2.bf16.msra.mxu0 0
        %1287 = vmatprep.subr.bf16.mxu0 0
        %1288 = vmatpush2.bf16.msra.mxu0 0
        %1289 = vmatprep.subr.bf16.mxu0 0
        %1290 = vmatpush2.bf16.msra.mxu0 0
        %1291 = vmatprep.subr.bf16.mxu0 0
        %1292 = vmatpush2.bf16.msra.mxu0 0
        %1293 = vmatprep.mubr.bf16.mxu0 0
        %1294 = vmatmul.mubr.bf16.gmra.mxu0 %v1256
        %v1295 = vpop.f32.mrf.mxu0
        %v1296 = vadd.f32 0.0, %v1295
        %v1297 = vpop.f32.mrf.mxu0
        %v1298 = vpop.f32.mrf.mxu0
        %v1299 = vpop.f32.mrf.mxu0
        %1300 = vdwg.mxu0
        %v1301 = vpack.c.bf16 %v1296, %v1296
        %v1302 = vld [vmem:[%s577 + $0xc] sm:$0xf]
        %v1304 = vsel %vm678, %v1301, 0
        %v1307 = vsel %vm752, %v1302, 0
        %1309 = vmatprep.subr.bf16.mxu0 0
        %1310 = vmatpush1.bf16.msra.mxu0 0
        %1311 = vmatprep.subr.bf16.mxu0 0
        %1312 = vmatpush1.bf16.msra.mxu0 0
        %1313 = vmatprep.subr.bf16.mxu0 0
        %1314 = vmatpush1.bf16.msra.mxu0 0
        %1315 = vmatprep.subr.bf16.mxu0 0
        %1316 = vmatpush1.bf16.msra.mxu0 0
        %1317 = vmatprep.subr.bf16.mxu0 0
        %1318 = vmatpush1.bf16.msra.mxu0 0
        %1319 = vmatprep.subr.bf16.mxu0 0
        %1320 = vmatpush1.bf16.msra.mxu0 0
        %1321 = vmatprep.subr.bf16.mxu0 0
        %1322 = vmatpush1.bf16.msra.mxu0 0
        %1323 = vmatprep.subr.bf16.mxu0 0
        %1324 = vmatpush1.bf16.msra.mxu0 %v1307
        %1325 = vmatprep.subr.bf16.mxu0 0
        %1326 = vmatpush2.bf16.msra.mxu0 0
        %1327 = vmatprep.subr.bf16.mxu0 0
        %1328 = vmatpush2.bf16.msra.mxu0 0
        %1329 = vmatprep.subr.bf16.mxu0 0
        %1330 = vmatpush2.bf16.msra.mxu0 0
        %1331 = vmatprep.subr.bf16.mxu0 0
        %1332 = vmatpush2.bf16.msra.mxu0 0
        %1333 = vmatprep.subr.bf16.mxu0 0
        %1334 = vmatpush2.bf16.msra.mxu0 0
        %1335 = vmatprep.subr.bf16.mxu0 0
        %1336 = vmatpush2.bf16.msra.mxu0 0
        %1337 = vmatprep.subr.bf16.mxu0 0
        %1338 = vmatpush2.bf16.msra.mxu0 0
        %1339 = vmatprep.subr.bf16.mxu0 0
        %1340 = vmatpush2.bf16.msra.mxu0 0
        %1341 = vmatprep.mubr.bf16.mxu0 0
        %1342 = vmatmul.mubr.bf16.gmra.mxu0 %v1304
        %v1343 = vpop.f32.mrf.mxu0
        %v1344 = vadd.f32 0.0, %v1343
        %v1345 = vpop.f32.mrf.mxu0
        %v1346 = vpop.f32.mrf.mxu0
        %v1347 = vpop.f32.mrf.mxu0
        %1348 = vdwg.mxu0
        %v1349 = vadd.f32 %v1180, %v1344
        %v1350 = vld [vmem:[%s580] sm:$0x1]
        %v1352 = vlaneseq
        %v1353 = vshrl.u32 %v1352, 7
        %v1354 = vsub.s32 0, %v1353
        %v1355 = vrot.slane %v1350, %v1354
        %v1357 = vadd.f32 %v1349, %v1355
        %v1358 = vpack.c.bf16 %v1357, %v1357
        %v1359 = vld [vmem:[%s585] sm:$0xf]
        %v1360 = vld [vmem:[%s585 + $0x4] sm:$0xf]
        %v1361 = vld [vmem:[%s585 + $0x8] sm:$0xf]
        %v1362 = vld [vmem:[%s585 + $0xc] sm:$0xf]
        %v1363 = vld [vmem:[%s588] sm:$0x1]
        %v1365 = vlaneseq
        %v1366 = vshrl.u32 %v1365, 7
        %v1367 = vsub.s32 0, %v1366
        %v1368 = vrot.slane %v1363, %v1367
        %v1374 = vunpack.c.l.b16 %v1359
        %v1375 = vunpack.c.l.b16 %v1360
        %v1376 = vunpack.c.l.b16 %v1361
        %v1377 = vunpack.c.l.b16 %v1362
        %v1378 = vpack.c.b16 %v1375, %v1374
        %v1379 = vpack.c.b16 %v1377, %v1376
        %v1383 = vsel %vm629, %v1358, 0
        %1385 = vmatprep.subr.bf16.mxu0 0
        %1386 = vmatpush1.bf16.msra.mxu0 0
        %1387 = vmatprep.subr.bf16.mxu0 0
        %1388 = vmatpush1.bf16.msra.mxu0 0
        %1389 = vmatprep.subr.bf16.mxu0 0
        %1390 = vmatpush1.bf16.msra.mxu0 0
        %1391 = vmatprep.subr.bf16.mxu0 0
        %1392 = vmatpush1.bf16.msra.mxu0 0
        %1393 = vmatprep.subr.bf16.mxu0 0
        %1394 = vmatpush1.bf16.msra.mxu0 0
        %1395 = vmatprep.subr.bf16.mxu0 0
        %1396 = vmatpush1.bf16.msra.mxu0 0
        %1397 = vmatprep.subr.bf16.mxu0 0
        %1398 = vmatpush1.bf16.msra.mxu0 %v1379
        %1399 = vmatprep.subr.bf16.mxu0 0
        %1400 = vmatpush1.bf16.msra.mxu0 %v1378
        %1401 = vmatprep.subr.bf16.mxu0 0
        %1402 = vmatpush2.bf16.msra.mxu0 0
        %1403 = vmatprep.subr.bf16.mxu0 0
        %1404 = vmatpush2.bf16.msra.mxu0 0
        %1405 = vmatprep.subr.bf16.mxu0 0
        %1406 = vmatpush2.bf16.msra.mxu0 0
        %1407 = vmatprep.subr.bf16.mxu0 0
        %1408 = vmatpush2.bf16.msra.mxu0 0
        %1409 = vmatprep.subr.bf16.mxu0 0
        %1410 = vmatpush2.bf16.msra.mxu0 0
        %1411 = vmatprep.subr.bf16.mxu0 0
        %1412 = vmatpush2.bf16.msra.mxu0 0
        %1413 = vmatprep.subr.bf16.mxu0 0
        %1414 = vmatpush2.bf16.msra.mxu0 0
        %1415 = vmatprep.subr.bf16.mxu0 0
        %1416 = vmatpush2.bf16.msra.mxu0 0
        %1417 = vmatprep.mubr.bf16.mxu0 0
        %1418 = vmatmul.mubr.bf16.gmra.mxu0 %v1383
        %v1419 = vpop.f32.mrf.mxu0
        %v1420 = vadd.f32 %v1368, %v1419
        %v1421 = vpop.f32.mrf.mxu0
        %v1422 = vpop.f32.mrf.mxu0
        %v1423 = vpop.f32.mrf.mxu0
        %1424 = vdwg.mxu0
        %v1425 = vmax.f32 %v1420, 0.0
        %v1426 = vpack.c.bf16 %v1425, %v1425
        %v1427 = vld [vmem:[%s593] sm:$0xf]
        %v1428 = vld [vmem:[%s593 + $0x4] sm:$0xf]
        %v1429 = vld [vmem:[%s593 + $0x8] sm:$0xf]
        %v1430 = vld [vmem:[%s593 + $0xc] sm:$0xf]
        %v1431 = vld [vmem:[%s593 + $0x10] sm:$0xf]
        %v1432 = vld [vmem:[%s593 + $0x14] sm:$0xf]
        %v1433 = vld [vmem:[%s593 + $0x18] sm:$0xf]
        %v1434 = vld [vmem:[%s593 + $0x1c] sm:$0xf]
        %v1435 = vld [vmem:[%s596] sm:$0x1]
        %v1437 = vlaneseq
        %v1438 = vshrl.u32 %v1437, 7
        %v1439 = vsub.s32 0, %v1438
        %v1440 = vrot.slane %v1435, %v1439
        %v1450 = vunpack.c.l.b16 %v1427
        %v1451 = vunpack.c.l.b16 %v1428
        %v1452 = vunpack.c.l.b16 %v1429
        %v1453 = vunpack.c.l.b16 %v1430
        %v1454 = vunpack.c.l.b16 %v1431
        %v1455 = vunpack.c.l.b16 %v1432
        %v1456 = vunpack.c.l.b16 %v1433
        %v1457 = vunpack.c.l.b16 %v1434
        %v1458 = vpack.c.b16 %v1451, %v1450
        %v1459 = vpack.c.b16 %v1453, %v1452
        %v1460 = vpack.c.b16 %v1455, %v1454
        %v1461 = vpack.c.b16 %v1457, %v1456
        %vm1466 = vcmask 523264
        %v1468 = vsel %vm1466, %v1426, 0
        %1470 = vmatprep.subr.bf16.mxu0 0
        %1471 = vmatpush1.bf16.msra.mxu0 0
        %1472 = vmatprep.subr.bf16.mxu0 0
        %1473 = vmatpush1.bf16.msra.mxu0 0
        %1474 = vmatprep.subr.bf16.mxu0 0
        %1475 = vmatpush1.bf16.msra.mxu0 0
        %1476 = vmatprep.subr.bf16.mxu0 0
        %1477 = vmatpush1.bf16.msra.mxu0 0
        %1478 = vmatprep.subr.bf16.mxu0 0
        %1479 = vmatpush1.bf16.msra.mxu0 %v1461
        %1480 = vmatprep.subr.bf16.mxu0 0
        %1481 = vmatpush1.bf16.msra.mxu0 %v1460
        %1482 = vmatprep.subr.bf16.mxu0 0
        %1483 = vmatpush1.bf16.msra.mxu0 %v1459
        %1484 = vmatprep.subr.bf16.mxu0 0
        %1485 = vmatpush1.bf16.msra.mxu0 %v1458
        %1486 = vmatprep.subr.bf16.mxu0 0
        %1487 = vmatpush2.bf16.msra.mxu0 0
        %1488 = vmatprep.subr.bf16.mxu0 0
        %1489 = vmatpush2.bf16.msra.mxu0 0
        %1490 = vmatprep.subr.bf16.mxu0 0
        %1491 = vmatpush2.bf16.msra.mxu0 0
        %1492 = vmatprep.subr.bf16.mxu0 0
        %1493 = vmatpush2.bf16.msra.mxu0 0
        %1494 = vmatprep.subr.bf16.mxu0 0
        %1495 = vmatpush2.bf16.msra.mxu0 0
        %1496 = vmatprep.subr.bf16.mxu0 0
        %1497 = vmatpush2.bf16.msra.mxu0 0
        %1498 = vmatprep.subr.bf16.mxu0 0
        %1499 = vmatpush2.bf16.msra.mxu0 0
        %1500 = vmatprep.subr.bf16.mxu0 0
        %1501 = vmatpush2.bf16.msra.mxu0 0
        %1502 = vmatprep.mubr.bf16.mxu0 0
        %1503 = vmatmul.mubr.bf16.gmra.mxu0 %v1468
        %v1504 = vpop.f32.mrf.mxu0
        %v1505 = vadd.f32 %v1440, %v1504
        %v1506 = vpop.f32.mrf.mxu0
        %v1507 = vpop.f32.mrf.mxu0
        %v1508 = vpop.f32.mrf.mxu0
        %1509 = vdwg.mxu0
        %v1510 = vpack.c.bf16 %v1505, %v1505
        %vm1511 = vcmask 257024
        %1512 = vst.msk [vmem:[%s557] sm:$0xf] %vm1511, %v1510
        %s1513 = sand.u32 %s315, 1
        %s1514 = scalar_lea.sflag [#allocation4], %s1513
        %s1515 = sand.u32 %s315, 1
        %s1516 = smul.addr %s1515, 4
        %s1517 = scalar_lea.vmem [#allocation7], %s1516
        %s1518 = sand.u32 %s343, 1
        %s1519 = scalar_lea.sflag [#allocation9], %s1518
        %s1520 = sand.u32 %s343, 1
        %s1521 = smul.addr %s1520, 4
        %s1522 = scalar_lea.vmem [#allocation8], %s1521
        // Predicated region
        $region73: #{tpu_custom_call.1} parent=59 // pred_check
          %p1523 = pneg %p325
        $region74: #{tpu_custom_call.1} parent=59 // pred_check_branch
          %1525 = sbr.rel (%p1523) target = $region76
        $region75: #{tpu_custom_call.1} parent=59 // pred_region
          %s1527 = ssub.s32 64, 64
          %1528 = vsyncadd %s1514, %s1527
          %s1529 = smul.addr %s39, 64
          %s1530 = scalar_lea.hbm %s10, %s1529
          %s1532 = sshll.u32 %s1517, 4
          %s1533 = int_to_ptr.vmem [resolvable:$true] %s1532
          %1535 = dma.vmem_to_hbm [thread:$0]  %s1533, 64, %s1530, %s1514
        $region76: #{tpu_custom_call.1} parent=59 // pred_fallthru
          _
        // Predicated region
        $region77: #{tpu_custom_call.1} parent=59 // pred_check
          %p1536 = pneg %p353
        $region78: #{tpu_custom_call.1} parent=59 // pred_check_branch
          %1538 = sbr.rel (%p1536) target = $region80
        $region79: #{tpu_custom_call.1} parent=59 // pred_region
          %s1540 = ssub.s32 64, 64
          %1541 = vsyncadd %s1519, %s1540
          %s1542 = smul.addr %s40, 2
          %s1543 = sadd.s32 %s39, %s1542
          %s1544 = smul.addr %s1543, 64
          %s1545 = scalar_lea.hbm %s11, %s1544
          %s1547 = sshll.u32 %s1522, 4
          %s1548 = int_to_ptr.vmem [resolvable:$true] %s1547
          %1550 = dma.vmem_to_hbm [thread:$0]  %s1548, 64, %s1545, %s1519
        $region80: #{tpu_custom_call.1} parent=59 // pred_fallthru
          _
      $region60: #{tpu_custom_call.1} parent=5 // pred_fallthru
        _
      %p1551 = scmp.le.s32.totalorder 2, %s30
      // Predicated region
      $region81: #{tpu_custom_call.1} parent=5 // pred_check
        %p1552 = pneg %p1551
      $region82: #{tpu_custom_call.1} parent=5 // pred_check_branch
        %1554 = sbr.rel (%p1552) target = $region84
      $region83: #{tpu_custom_call.1} parent=5 // pred_region
        %s1555 = ssub.s32 %s30, 2
        // Predicated region
        $region85: #{tpu_custom_call.1} parent=83 // pred_check
          %p1556 = pneg %p331
        $region86: #{tpu_custom_call.1} parent=83 // pred_check_branch
          %1558 = sbr.rel (%p1556) target = $region88
        $region87: #{tpu_custom_call.1} parent=83 // pred_region
          %s1559 = sand.u32 %s316, 1
          %s1560 = scalar_lea.sflag [#allocation4], %s1559
          %s1561 = sand.u32 %s316, 1
          %s1562 = smul.addr %s1561, 4
          %s1563 = scalar_lea.vmem [#allocation7], %s1562
          %1564 = dma.done %s1560, 64
        $region88: #{tpu_custom_call.1} parent=83 // pred_fallthru
          _
        // Predicated region
        $region89: #{tpu_custom_call.1} parent=83 // pred_check
          %p1565 = pneg %p359
        $region90: #{tpu_custom_call.1} parent=83 // pred_check_branch
          %1567 = sbr.rel (%p1565) target = $region92
        $region91: #{tpu_custom_call.1} parent=83 // pred_region
          %s1568 = sand.u32 %s344, 1
          %s1569 = scalar_lea.sflag [#allocation9], %s1568
          %s1570 = sand.u32 %s344, 1
          %s1571 = smul.addr %s1570, 4
          %s1572 = scalar_lea.vmem [#allocation8], %s1571
          %1573 = dma.done %s1569, 64
        $region92: #{tpu_custom_call.1} parent=83 // pred_fallthru
          _
      $region84: #{tpu_custom_call.1} parent=5 // pred_fallthru
        _
    $region6: #{tpu_custom_call.1} parent=1 // loop_footer
      %s34 = sadd.s32 1, %s30
    $region7: #{tpu_custom_call.1} parent=1 // loop_footer_branch
      %29 = sbr.rel target = $region3
    $region8: #{tpu_custom_call.1} parent=1 // loop_exit
      _
    %1574 = vsyncpa [#allocation3], 1
    %s1575 = scalar_lea.sflag [#allocation3], 1
    %1576 = vsyncpa %s1575, 1
    %1577 = vsyncpa [#allocation6], 1
    %s1578 = scalar_lea.sflag [#allocation6], 1
    %1579 = vsyncpa %s1578, 1
    %1580 = vsyncpa [#allocation4], 1
    %s1581 = scalar_lea.sflag [#allocation4], 1
    %1582 = vsyncpa %s1581, 1
    %1583 = vsyncpa [#allocation9], 1
    %s1584 = scalar_lea.sflag [#allocation9], 1
    %1585 = vsyncpa %s1584, 1

</llo_original>
